<compile_context>
chip_gen: v7x
topology: tpu7x:2x2x1
jax: 0.10.0
libtpu: 0.0.40
codegen_flags: <defaults>
</compile_context>

<pallas_src>
import jax
import jax.numpy as jnp
from jax import lax
from jax.experimental import pallas as pl
from jax.experimental.pallas import tpu as pltpu


def _mlp_kernel(x_ref, w_in_ref, b_in_ref, wh_ref, bh_ref, w_out_ref, b_out_ref,
                o_ref):
    # Input layer with the transpose folded into the contraction:
    #   x_ref: (in_dim, TILE_B), w_in: (in_dim, N)  ->  (TILE_B, N)
    h = lax.dot_general(
        x_ref[...], w_in_ref[...],
        dimension_numbers=(((0,), (0,)), ((), ())),
        preferred_element_type=jnp.float32,
        precision=lax.Precision.HIGHEST)
    h = jnp.tanh(h + b_in_ref[...])

    # Hidden layers: static unroll over n_layers (weights stacked on axis 0).
    # Activation `h` stays in vregs -- no VMEM scratch round-trip per layer.
    for i in range(wh_ref.shape[0]):
        z = jnp.dot(h, wh_ref[i], preferred_element_type=jnp.float32,
                    precision=lax.Precision.HIGHEST)
        h = jnp.tanh(z + bh_ref[i])

    # Output layer (no activation).
    out = jnp.dot(h, w_out_ref[...], preferred_element_type=jnp.float32,
                  precision=lax.Precision.HIGHEST)
    o_ref[...] = out + b_out_ref[...]


def inverse_autoencoder_forward(x, params, *, tile_b=512):
    """x: (in_dim, batch) -> (batch, out_dim), matching the torch forward."""
    w_in, b_in, wh, bh, w_out, b_out = params
    x = jnp.asarray(x, jnp.float32)                      # stays (in_dim, batch)
    in_dim, B = x.shape
    n_layers, n_neurons = wh.shape[0], w_in.shape[1]
    out_dim = w_out.shape[1]

    # Batch tile: lane-dense (multiple of 128) tiles once B is big enough to
    # split; otherwise the whole batch in one grid step (full-dim block is
    # always legal).
    tb = tile_b if (B % tile_b == 0) else B
    grid = (B // tb,)

    return pl.pallas_call(
        _mlp_kernel,
        out_shape=jax.ShapeDtypeStruct((B, out_dim), jnp.float32),
        grid=grid,
        in_specs=[
            pl.BlockSpec((in_dim, tb), lambda i: (0, i)),                        # x tile
            pl.BlockSpec((in_dim, n_neurons), lambda i: (0, 0)),                 # w_in
            pl.BlockSpec((1, n_neurons), lambda i: (0, 0)),                      # b_in
            pl.BlockSpec((n_layers, n_neurons, n_neurons), lambda i: (0, 0, 0)), # wh
            pl.BlockSpec((n_layers, 1, n_neurons), lambda i: (0, 0, 0)),         # bh
            pl.BlockSpec((n_neurons, out_dim), lambda i: (0, 0)),                # w_out
            pl.BlockSpec((1, out_dim), lambda i: (0, 0)),                        # b_out
        ],
        out_specs=pl.BlockSpec((tb, out_dim), lambda i: (i, 0)),
        compiler_params=pltpu.CompilerParams(
            dimension_semantics=("parallel",)),
    )(x, w_in, b_in, wh, bh, w_out, b_out)


def init_params(key, in_dim, n_neurons, out_dim, std_weights, n_layers):
    """Deterministic parameter init mirroring the torch module's shapes.

    Weights are stored transposed relative to torch (in_features, out_features)
    so the kernel can do y = x @ W + b directly.
    """
    k = jax.random.split(key, 6)
    # inp_layer / out_layer: PyTorch default Linear init U(-1/sqrt(fan_in), +...)
    lim_in = 1.0 / jnp.sqrt(in_dim)
    w_in = jax.random.uniform(k[0], (in_dim, n_neurons), jnp.float32, -lim_in, lim_in)
    b_in = jax.random.uniform(k[1], (1, n_neurons), jnp.float32, -lim_in, lim_in)

    # hidden layers: normal(0, std_weights / sqrt(n_neurons)) weights,
    # default-uniform biases, stacked along a leading n_layers axis.
    std_h = std_weights / jnp.sqrt(n_neurons)
    wh = std_h * jax.random.normal(k[2], (n_layers, n_neurons, n_neurons), jnp.float32)
    lim_h = 1.0 / jnp.sqrt(n_neurons)
    bh = jax.random.uniform(k[3], (n_layers, 1, n_neurons), jnp.float32, -lim_h, lim_h)

    lim_out = 1.0 / jnp.sqrt(n_neurons)
    w_out = jax.random.uniform(k[4], (n_neurons, out_dim), jnp.float32, -lim_out, lim_out)
    b_out = jax.random.uniform(k[5], (1, out_dim), jnp.float32, -lim_out, lim_out)
    return (w_in, b_in, wh, bh, w_out, b_out)


def reference_forward(x, params):
    w_in, b_in, wh, bh, w_out, b_out = params
    hp = lax.Precision.HIGHEST
    out = jnp.tanh(jnp.dot(jnp.asarray(x, jnp.float32).T, w_in, precision=hp) + b_in)
    for i in range(wh.shape[0]):
        out = jnp.tanh(jnp.dot(out, wh[i], precision=hp) + bh[i])
    return jnp.dot(out, w_out, precision=hp) + b_out


if __name__ == "__main__":
    # Small synthetic configuration consistent with the module's forward.
    in_dim, n_neurons, out_dim = 8, 32, 4
    n_layers, std_weights = 2, 0.5
    batch = 16

    key = jax.random.PRNGKey(0)
    kx, kp = jax.random.split(key)
    params = init_params(kp, in_dim, n_neurons, out_dim, std_weights, n_layers)

    # x has shape (in_dim, batch): the torch forward transposes it internally.
    x = jax.random.normal(kx, (in_dim, batch), jnp.float32)

    out = inverse_autoencoder_forward(x, params)
    out = jax.block_until_ready(out)

    ref = reference_forward(x, params)
    assert out.shape == (batch, out_dim), out.shape
    assert jnp.allclose(out, ref, atol=1e-5, rtol=1e-5), float(jnp.max(jnp.abs(out - ref)))

    print("KERNEL_OK")
</pallas_src>

<mosaic_0001>
module attributes {stable_mosaic.version = 11 : i64} {
  func.func @_mlp_kernel(%arg0: i32, %arg1: memref<8x16xf32, #tpu.memory_space<vmem>>, %arg2: memref<8x32xf32, #tpu.memory_space<vmem>>, %arg3: memref<1x32xf32, #tpu.memory_space<vmem>>, %arg4: memref<2x32x32xf32, #tpu.memory_space<vmem>>, %arg5: memref<2x1x32xf32, #tpu.memory_space<vmem>>, %arg6: memref<32x4xf32, #tpu.memory_space<vmem>>, %arg7: memref<1x4xf32, #tpu.memory_space<vmem>>, %arg8: memref<16x4xf32, #tpu.memory_space<vmem>>) attributes {dimension_semantics = [#tpu.dimension_semantics<parallel>], iteration_bounds = array<i64: 1>, scalar_prefetch = 0 : i64, scratch_operands = 0 : i64, tpu.core_type = #tpu.core_type<tc>, window_params = [{transform_indices = @transform_0, window_bounds = array<i64: 8, 16>}, {pipeline_mode = #tpu.pipeline_mode<synchronous>, transform_indices = @transform_1, window_bounds = array<i64: 8, 32>}, {pipeline_mode = #tpu.pipeline_mode<synchronous>, transform_indices = @transform_2, window_bounds = array<i64: 1, 32>}, {pipeline_mode = #tpu.pipeline_mode<synchronous>, transform_indices = @transform_3, window_bounds = array<i64: 2, 32, 32>}, {pipeline_mode = #tpu.pipeline_mode<synchronous>, transform_indices = @transform_4, window_bounds = array<i64: 2, 1, 32>}, {pipeline_mode = #tpu.pipeline_mode<synchronous>, transform_indices = @transform_5, window_bounds = array<i64: 32, 4>}, {pipeline_mode = #tpu.pipeline_mode<synchronous>, transform_indices = @transform_6, window_bounds = array<i64: 1, 4>}, {transform_indices = @transform_7, window_bounds = array<i64: 16, 4>}]} {
    %c0 = arith.constant 0 : index
    %c0_0 = arith.constant 0 : index
    %0 = vector.load %arg1[%c0, %c0_0] : memref<8x16xf32, #tpu.memory_space<vmem>>, vector<8x16xf32>
    %c0_1 = arith.constant 0 : index
    %c0_2 = arith.constant 0 : index
    %1 = vector.load %arg2[%c0_1, %c0_2] : memref<8x32xf32, #tpu.memory_space<vmem>>, vector<8x32xf32>
    %cst = arith.constant dense<0.000000e+00> : vector<16x32xf32>
    %2 = tpu.matmul %0, %1, %cst {dimension_numbers = #tpu.dot_dimension_numbers<[0], [0], [1], [1], [0, 1, 1, 1], [], []>, precision = #tpu.contract_precision<fp32>} : vector<8x16xf32>, vector<8x32xf32>, vector<16x32xf32> -> vector<16x32xf32>
    %c0_3 = arith.constant 0 : index
    %c0_4 = arith.constant 0 : index
    %3 = vector.load %arg3[%c0_3, %c0_4] : memref<1x32xf32, #tpu.memory_space<vmem>>, vector<1x32xf32>
    %4 = vector.broadcast %3 : vector<1x32xf32> to vector<16x32xf32>
    %5 = arith.addf %2, %4 : vector<16x32xf32>
    %6 = math.tanh %5 : vector<16x32xf32>
    %c0_5 = arith.constant 0 : index
    %c0_6 = arith.constant 0 : index
    %c0_7 = arith.constant 0 : index
    %7 = vector.load %arg4[%c0_5, %c0_6, %c0_7] : memref<2x32x32xf32, #tpu.memory_space<vmem>>, vector<1x32x32xf32>
    %8 = vector.shape_cast %7 : vector<1x32x32xf32> to vector<32x32xf32>
    %cst_8 = arith.constant dense<0.000000e+00> : vector<16x32xf32>
    %9 = tpu.matmul %6, %8, %cst_8 {dimension_numbers = #tpu.dot_dimension_numbers<[1], [0], [0], [1], [0, 0, 1, 1], [], []>, precision = #tpu.contract_precision<fp32>} : vector<16x32xf32>, vector<32x32xf32>, vector<16x32xf32> -> vector<16x32xf32>
    %c0_9 = arith.constant 0 : index
    %c0_10 = arith.constant 0 : index
    %c0_11 = arith.constant 0 : index
    %10 = vector.load %arg5[%c0_9, %c0_10, %c0_11] : memref<2x1x32xf32, #tpu.memory_space<vmem>>, vector<1x1x32xf32>
    %11 = vector.shape_cast %10 : vector<1x1x32xf32> to vector<1x32xf32>
    %12 = vector.broadcast %11 : vector<1x32xf32> to vector<16x32xf32>
    %13 = arith.addf %9, %12 : vector<16x32xf32>
    %14 = math.tanh %13 : vector<16x32xf32>
    %c1 = arith.constant 1 : index
    %c0_12 = arith.constant 0 : index
    %c0_13 = arith.constant 0 : index
    %15 = vector.load %arg4[%c1, %c0_12, %c0_13] : memref<2x32x32xf32, #tpu.memory_space<vmem>>, vector<1x32x32xf32>
    %16 = vector.shape_cast %15 : vector<1x32x32xf32> to vector<32x32xf32>
    %cst_14 = arith.constant dense<0.000000e+00> : vector<16x32xf32>
    %17 = tpu.matmul %14, %16, %cst_14 {dimension_numbers = #tpu.dot_dimension_numbers<[1], [0], [0], [1], [0, 0, 1, 1], [], []>, precision = #tpu.contract_precision<fp32>} : vector<16x32xf32>, vector<32x32xf32>, vector<16x32xf32> -> vector<16x32xf32>
    %c1_15 = arith.constant 1 : index
    %c0_16 = arith.constant 0 : index
    %c0_17 = arith.constant 0 : index
    %18 = vector.load %arg5[%c1_15, %c0_16, %c0_17] : memref<2x1x32xf32, #tpu.memory_space<vmem>>, vector<1x1x32xf32>
    %19 = vector.shape_cast %18 : vector<1x1x32xf32> to vector<1x32xf32>
    %20 = vector.broadcast %19 : vector<1x32xf32> to vector<16x32xf32>
    %21 = arith.addf %17, %20 : vector<16x32xf32>
    %22 = math.tanh %21 : vector<16x32xf32>
    %c0_18 = arith.constant 0 : index
    %c0_19 = arith.constant 0 : index
    %23 = vector.load %arg6[%c0_18, %c0_19] : memref<32x4xf32, #tpu.memory_space<vmem>>, vector<32x4xf32>
    %cst_20 = arith.constant dense<0.000000e+00> : vector<16x4xf32>
    %24 = tpu.matmul %22, %23, %cst_20 {dimension_numbers = #tpu.dot_dimension_numbers<[1], [0], [0], [1], [0, 0, 1, 1], [], []>, precision = #tpu.contract_precision<fp32>} : vector<16x32xf32>, vector<32x4xf32>, vector<16x4xf32> -> vector<16x4xf32>
    %c0_21 = arith.constant 0 : index
    %c0_22 = arith.constant 0 : index
    %25 = vector.load %arg7[%c0_21, %c0_22] : memref<1x4xf32, #tpu.memory_space<vmem>>, vector<1x4xf32>
    %26 = vector.broadcast %25 : vector<1x4xf32> to vector<16x4xf32>
    %27 = arith.addf %24, %26 : vector<16x4xf32>
    %c0_23 = arith.constant 0 : index
    %c0_24 = arith.constant 0 : index
    %28 = vector.load %arg8[%c0_23, %c0_24] : memref<16x4xf32, #tpu.memory_space<vmem>>, vector<16x4xf32>
    tpu.vector_store %arg8[%c0_23, %c0_24], %27 {strides = array<i32>} : memref<16x4xf32, #tpu.memory_space<vmem>>, vector<16x4xf32>,
    return
  }
  func.func @transform_0(%arg0: i32) -> (i32, i32) {
    %c0_i32 = arith.constant 0 : i32
    %c0_i32_0 = arith.constant 0 : i32
    return %c0_i32, %arg0 : i32, i32
  }
  func.func @transform_1(%arg0: i32) -> (i32, i32) {
    %c0_i32 = arith.constant 0 : i32
    %c0_i32_0 = arith.constant 0 : i32
    %c0_i32_1 = arith.constant 0 : i32
    return %c0_i32, %c0_i32_0 : i32, i32
  }
  func.func @transform_2(%arg0: i32) -> (i32, i32) {
    %c0_i32 = arith.constant 0 : i32
    %c0_i32_0 = arith.constant 0 : i32
    %c0_i32_1 = arith.constant 0 : i32
    return %c0_i32, %c0_i32_0 : i32, i32
  }
  func.func @transform_3(%arg0: i32) -> (i32, i32, i32) {
    %c0_i32 = arith.constant 0 : i32
    %c0_i32_0 = arith.constant 0 : i32
    %c0_i32_1 = arith.constant 0 : i32
    %c0_i32_2 = arith.constant 0 : i32
    return %c0_i32, %c0_i32_0, %c0_i32_1 : i32, i32, i32
  }
  func.func @transform_4(%arg0: i32) -> (i32, i32, i32) {
    %c0_i32 = arith.constant 0 : i32
    %c0_i32_0 = arith.constant 0 : i32
    %c0_i32_1 = arith.constant 0 : i32
    %c0_i32_2 = arith.constant 0 : i32
    return %c0_i32, %c0_i32_0, %c0_i32_1 : i32, i32, i32
  }
  func.func @transform_5(%arg0: i32) -> (i32, i32) {
    %c0_i32 = arith.constant 0 : i32
    %c0_i32_0 = arith.constant 0 : i32
    %c0_i32_1 = arith.constant 0 : i32
    return %c0_i32, %c0_i32_0 : i32, i32
  }
  func.func @transform_6(%arg0: i32) -> (i32, i32) {
    %c0_i32 = arith.constant 0 : i32
    %c0_i32_0 = arith.constant 0 : i32
    %c0_i32_1 = arith.constant 0 : i32
    return %c0_i32, %c0_i32_0 : i32, i32
  }
  func.func @transform_7(%arg0: i32) -> (i32, i32) {
    %c0_i32 = arith.constant 0 : i32
    %c0_i32_0 = arith.constant 0 : i32
    return %arg0, %c0_i32 : i32, i32
  }
}

</mosaic_0001>

<llo_original>
// kernel: tpu_custom_call.1
$region0: #{tpu_custom_call.1}
  #allocation0 [shape = 'u32[]', space=smem, size = 0x4, offset = 0x4, fixed_abs, tag = 'smem constant byte address 0x4 - core index']
  #allocation1 [shape = 'u32[144,128]{1,0:T(1,128)}', space=vmem, size = 0x12000, scoped, tag = 'internal scratch']
  %s0 = inlined_call_operand.vmem [shape: f32[8,16], index: 0, kind: input, shape index: {}]
  %s1 = inlined_call_operand.vmem [shape: f32[8,32], index: 1, kind: input, shape index: {}]
  %s2 = inlined_call_operand.vmem [shape: f32[1,32], index: 2, kind: input, shape index: {}]
  %s3 = inlined_call_operand.hbm [shape: f32[2,32,32], index: 3, kind: input, shape index: {}]
  %s4 = inlined_call_operand.vmem [shape: f32[2,1,32], index: 4, kind: input, shape index: {}]
  %s5 = inlined_call_operand.vmem [shape: f32[32,4], index: 5, kind: input, shape index: {}]
  %s6 = inlined_call_operand.vmem [shape: f32[1,4], index: 6, kind: input, shape index: {}]
  %s7 = inlined_call_operand.vmem [shape: f32[16,4], index: 7, kind: output, shape index: {}]
  %s8 = sld [smem:[#allocation0]]
  $region42: #{tpu_custom_call.1} parent=0
    _
  %s10 = ssub.s32 1, %s8
  %s11 = scalar_select 0, %s10, %s8
  $region1: #{tpu_custom_call.1} parent=0
    #allocation2 [shape = 'u8[32768]{0}', space=vmem, size = 0x8000, scoped, tag = 'input window, operand 3, single buffered']
    #allocation3 [shape = 's32[1]{0}', space=sflag, size = 0x4, scoped, tag = 'scoped memory for tpu_custom_call.1']
    %12 = vsyncpa [#allocation3], 0
    // Predicated region
    $region2: #{tpu_custom_call.1} parent=1 // pred_check
      _
    $region3: #{tpu_custom_call.1} parent=1 // pred_check_branch
      %14 = sbr.rel (0) target = $region5
    $region4: #{tpu_custom_call.1} parent=1 // pred_region
      _
    $region5: #{tpu_custom_call.1} parent=1 // pred_fallthru
      _
    // Predicated region
    $region6: #{tpu_custom_call.1} parent=1 // pred_check
      _
    $region7: #{tpu_custom_call.1} parent=1 // pred_check_branch
      %16 = sbr.rel (0) target = $region9
    $region8: #{tpu_custom_call.1} parent=1 // pred_region
      _
    $region9: #{tpu_custom_call.1} parent=1 // pred_fallthru
      _
    // Predicated region
    $region10: #{tpu_custom_call.1} parent=1 // pred_check
      _
    $region11: #{tpu_custom_call.1} parent=1 // pred_check_branch
      %18 = sbr.rel (0) target = $region13
    $region12: #{tpu_custom_call.1} parent=1 // pred_region
      _
    $region13: #{tpu_custom_call.1} parent=1 // pred_fallthru
      _
    // Predicated region
    $region14: #{tpu_custom_call.1} parent=1 // pred_check
      _
    $region15: #{tpu_custom_call.1} parent=1 // pred_check_branch
      %20 = sbr.rel (0) target = $region17
    $region16: #{tpu_custom_call.1} parent=1 // pred_region
      %s22 = ssub.s32 1024, 1024
      %23 = vsyncadd [#allocation3], %s22
      %s24 = sshll.u32 [#allocation2], 4
      %s25 = int_to_ptr.vmem [resolvable:$true] %s24
      %30 = dma.hbm_to_vmem [thread:$0]  %s3, 1024, %s25, [#allocation3], 128, 128, 8
    $region17: #{tpu_custom_call.1} parent=1 // pred_fallthru
      _
    // Predicated region
    $region18: #{tpu_custom_call.1} parent=1 // pred_check
      _
    $region19: #{tpu_custom_call.1} parent=1 // pred_check_branch
      %32 = sbr.rel (0) target = $region21
    $region20: #{tpu_custom_call.1} parent=1 // pred_region
      _
    $region21: #{tpu_custom_call.1} parent=1 // pred_fallthru
      _
    // Predicated region
    $region22: #{tpu_custom_call.1} parent=1 // pred_check
      _
    $region23: #{tpu_custom_call.1} parent=1 // pred_check_branch
      %34 = sbr.rel (0) target = $region25
    $region24: #{tpu_custom_call.1} parent=1 // pred_region
      _
    $region25: #{tpu_custom_call.1} parent=1 // pred_fallthru
      _
    // Predicated region
    $region26: #{tpu_custom_call.1} parent=1 // pred_check
      _
    $region27: #{tpu_custom_call.1} parent=1 // pred_check_branch
      %36 = sbr.rel (0) target = $region29
    $region28: #{tpu_custom_call.1} parent=1 // pred_region
      _
    $region29: #{tpu_custom_call.1} parent=1 // pred_fallthru
      _
    // Predicated region
    $region30: #{tpu_custom_call.1} parent=1 // pred_check
      _
    $region31: #{tpu_custom_call.1} parent=1 // pred_check_branch
      %38 = sbr.rel (0) target = $region33
    $region32: #{tpu_custom_call.1} parent=1 // pred_region
      %39 = dma.done [#allocation3], 1024
    $region33: #{tpu_custom_call.1} parent=1 // pred_fallthru
      _
    %v40 = vld [vmem:[%s0] sm:$0xff]
    %v41 = vld [vmem:[%s1] sm:$0xff]
    %v42 = vld [vmem:[%s2] sm:$0x1]
    %v44 = vlaneseq
    %v45 = vshrl.u32 %v44, 7
    %v46 = vsub.s32 0, %v45
    %v47 = vrot.slane %v42, %v46
    %49 = vxpose.xlu0.b32.start [1/16] %v40, 128
    %50 = vxpose.xlu0.b32.cont [2/16] 0.0, 128
    %51 = vxpose.xlu0.b32.cont [3/16] 0.0, 128
    %52 = vxpose.xlu0.b32.cont [4/16] 0.0, 128
    %53 = vxpose.xlu0.b32.cont [5/16] 0.0, 128
    %54 = vxpose.xlu0.b32.cont [6/16] 0.0, 128
    %55 = vxpose.xlu0.b32.cont [7/16] 0.0, 128
    %56 = vxpose.xlu0.b32.cont [8/16] 0.0, 128
    %57 = vxpose.xlu0.b32.cont [9/16] 0.0, 128
    %58 = vxpose.xlu0.b32.cont [10/16] 0.0, 128
    %59 = vxpose.xlu0.b32.cont [11/16] 0.0, 128
    %60 = vxpose.xlu0.b32.cont [12/16] 0.0, 128
    %61 = vxpose.xlu0.b32.cont [13/16] 0.0, 128
    %62 = vxpose.xlu0.b32.cont [14/16] 0.0, 128
    %63 = vxpose.xlu0.b32.cont [15/16] 0.0, 128
    %64 = vxpose.xlu0.b32.end [16/16] 0.0, 128
    %v65 = vpop.trf.xlu0
    %v66 = vpop.trf.xlu0
    %v67 = vpop.trf.xlu0
    %v68 = vpop.trf.xlu0
    %v69 = vpop.trf.xlu0
    %v70 = vpop.trf.xlu0
    %v71 = vpop.trf.xlu0
    %v72 = vpop.trf.xlu0
    %v73 = vpop.trf.xlu0
    %v74 = vpop.trf.xlu0
    %v75 = vpop.trf.xlu0
    %v76 = vpop.trf.xlu0
    %v77 = vpop.trf.xlu0
    %v78 = vpop.trf.xlu0
    %v79 = vpop.trf.xlu0
    %v80 = vpop.trf.xlu0
    %vm81 = vcmask 64512
    %v83 = vsel %vm81, %v65, 0
    %v86 = vsel %vm81, %v66, 0
    %88 = vmatprep.subr.mxu0 0.0
    %v89 = vand.u32 %v41, 4294901760
    %90 = vmatpush1.msra.mxu0 %v89
    %91 = vmatprep.subr.mxu0 0.0
    %92 = vmatpush1.msra.mxu0 0.0
    %93 = vmatprep.subr.mxu0 0.0
    %94 = vmatpush1.msra.mxu0 0.0
    %95 = vmatprep.subr.mxu0 0.0
    %96 = vmatpush1.msra.mxu0 0.0
    %97 = vmatprep.subr.mxu0 0.0
    %98 = vmatpush1.msra.mxu0 0.0
    %99 = vmatprep.subr.mxu0 0.0
    %100 = vmatpush1.msra.mxu0 0.0
    %101 = vmatprep.subr.mxu0 0.0
    %102 = vmatpush1.msra.mxu0 0.0
    %103 = vmatprep.subr.mxu0 0.0
    %104 = vmatpush1.msra.mxu0 0.0
    %105 = vmatprep.subr.mxu0 0.0
    %106 = vmatpush1.msra.mxu0 0.0
    %107 = vmatprep.subr.mxu0 0.0
    %108 = vmatpush1.msra.mxu0 0.0
    %109 = vmatprep.subr.mxu0 0.0
    %110 = vmatpush1.msra.mxu0 0.0
    %111 = vmatprep.subr.mxu0 0.0
    %112 = vmatpush1.msra.mxu0 0.0
    %113 = vmatprep.subr.mxu0 0.0
    %114 = vmatpush1.msra.mxu0 0.0
    %115 = vmatprep.subr.mxu0 0.0
    %116 = vmatpush1.msra.mxu0 0.0
    %117 = vmatprep.subr.mxu0 0.0
    %118 = vmatpush1.msra.mxu0 0.0
    %119 = vmatprep.subr.mxu0 0.0
    %120 = vmatpush1.msra.mxu0 0.0
    %121 = vmatprep.subr.mxu0 0.0
    %122 = vmatpush1.msra.mxu0 0.0
    %123 = vmatprep.subr.mxu0 0.0
    %124 = vmatpush1.msra.mxu0 0.0
    %125 = vmatprep.subr.mxu0 0.0
    %126 = vmatpush1.msra.mxu0 0.0
    %127 = vmatprep.subr.mxu0 0.0
    %128 = vmatpush1.msra.mxu0 0.0
    %129 = vmatprep.subr.mxu0 0.0
    %130 = vmatpush1.msra.mxu0 0.0
    %131 = vmatprep.subr.mxu0 0.0
    %132 = vmatpush1.msra.mxu0 0.0
    %133 = vmatprep.subr.mxu0 0.0
    %134 = vmatpush1.msra.mxu0 0.0
    %135 = vmatprep.subr.mxu0 0.0
    %136 = vmatpush1.msra.mxu0 0.0
    %137 = vmatprep.subr.mxu0 0.0
    %138 = vmatpush1.msra.mxu0 0.0
    %139 = vmatprep.subr.mxu0 0.0
    %140 = vmatpush1.msra.mxu0 0.0
    %141 = vmatprep.subr.mxu0 0.0
    %142 = vmatpush1.msra.mxu0 0.0
    %143 = vmatprep.subr.mxu0 0.0
    %144 = vmatpush1.msra.mxu0 0.0
    %145 = vmatprep.subr.mxu0 0.0
    %146 = vmatpush1.msra.mxu0 0.0
    %147 = vmatprep.subr.mxu0 0.0
    %148 = vmatpush1.msra.mxu0 0.0
    %149 = vmatprep.subr.mxu0 0.0
    %150 = vmatpush1.msra.mxu0 0.0
    %151 = vmatprep.subr.mxu0 0.0
    %152 = vmatpush1.msra.mxu0 0.0
    %153 = vmatprep.mubr.f32.mxu0 0.0
    %v154 = vand.u32 %v83, 4294901760
    %v155 = vsub.f32 %v83, %v154
    %v156 = vand.u32 %v155, 4294901760
    %v157 = vsub.f32 %v155, %v156
    %v158 = vand.u32 %v157, 4294901760
    %159 = vmatmul.mubr.f32.gmra.mrb[0].mxu0 %v158
    %v160 = vpop.f32.mrb[0].mxu0
    %v161 = vadd.f32 %v47, %v160
    %v162 = vpop.f32.mrb[0].mxu0
    %163 = vmatprep.mubr.f32.mxu0 0.0
    %v164 = vand.u32 %v86, 4294901760
    %v165 = vsub.f32 %v86, %v164
    %v166 = vand.u32 %v165, 4294901760
    %v167 = vsub.f32 %v165, %v166
    %v168 = vand.u32 %v167, 4294901760
    %169 = vmatmul.mubr.f32.gmra.mrb[0].mxu0 %v168
    %v170 = vpop.f32.mrb[0].mxu0
    %v171 = vadd.f32 %v47, %v170
    %v172 = vpop.f32.mrb[0].mxu0
    %173 = vdwg.mxu0
    %174 = vmatprep.subr.mxu0 0.0
    %v175 = vand.u32 %v41, 4294901760
    %v176 = vsub.f32 %v41, %v175
    %v177 = vand.u32 %v176, 4294901760
    %v178 = vsub.f32 %v176, %v177
    %v179 = vand.u32 %v178, 4294901760
    %180 = vmatpush1.msra.mxu0 %v179
    %181 = vmatprep.subr.mxu0 0.0
    %182 = vmatpush1.msra.mxu0 0.0
    %183 = vmatprep.subr.mxu0 0.0
    %184 = vmatpush1.msra.mxu0 0.0
    %185 = vmatprep.subr.mxu0 0.0
    %186 = vmatpush1.msra.mxu0 0.0
    %187 = vmatprep.subr.mxu0 0.0
    %188 = vmatpush1.msra.mxu0 0.0
    %189 = vmatprep.subr.mxu0 0.0
    %190 = vmatpush1.msra.mxu0 0.0
    %191 = vmatprep.subr.mxu0 0.0
    %192 = vmatpush1.msra.mxu0 0.0
    %193 = vmatprep.subr.mxu0 0.0
    %194 = vmatpush1.msra.mxu0 0.0
    %195 = vmatprep.subr.mxu0 0.0
    %196 = vmatpush1.msra.mxu0 0.0
    %197 = vmatprep.subr.mxu0 0.0
    %198 = vmatpush1.msra.mxu0 0.0
    %199 = vmatprep.subr.mxu0 0.0
    %200 = vmatpush1.msra.mxu0 0.0
    %201 = vmatprep.subr.mxu0 0.0
    %202 = vmatpush1.msra.mxu0 0.0
    %203 = vmatprep.subr.mxu0 0.0
    %204 = vmatpush1.msra.mxu0 0.0
    %205 = vmatprep.subr.mxu0 0.0
    %206 = vmatpush1.msra.mxu0 0.0
    %207 = vmatprep.subr.mxu0 0.0
    %208 = vmatpush1.msra.mxu0 0.0
    %209 = vmatprep.subr.mxu0 0.0
    %210 = vmatpush1.msra.mxu0 0.0
    %211 = vmatprep.subr.mxu0 0.0
    %212 = vmatpush1.msra.mxu0 0.0
    %213 = vmatprep.subr.mxu0 0.0
    %214 = vmatpush1.msra.mxu0 0.0
    %215 = vmatprep.subr.mxu0 0.0
    %216 = vmatpush1.msra.mxu0 0.0
    %217 = vmatprep.subr.mxu0 0.0
    %218 = vmatpush1.msra.mxu0 0.0
    %219 = vmatprep.subr.mxu0 0.0
    %220 = vmatpush1.msra.mxu0 0.0
    %221 = vmatprep.subr.mxu0 0.0
    %222 = vmatpush1.msra.mxu0 0.0
    %223 = vmatprep.subr.mxu0 0.0
    %224 = vmatpush1.msra.mxu0 0.0
    %225 = vmatprep.subr.mxu0 0.0
    %226 = vmatpush1.msra.mxu0 0.0
    %227 = vmatprep.subr.mxu0 0.0
    %228 = vmatpush1.msra.mxu0 0.0
    %229 = vmatprep.subr.mxu0 0.0
    %230 = vmatpush1.msra.mxu0 0.0
    %231 = vmatprep.subr.mxu0 0.0
    %232 = vmatpush1.msra.mxu0 0.0
    %233 = vmatprep.subr.mxu0 0.0
    %234 = vmatpush1.msra.mxu0 0.0
    %235 = vmatprep.subr.mxu0 0.0
    %236 = vmatpush1.msra.mxu0 0.0
    %237 = vmatprep.subr.mxu0 0.0
    %238 = vmatpush1.msra.mxu0 0.0
    %239 = vmatprep.subr.mxu0 0.0
    %240 = vmatpush1.msra.mxu0 0.0
    %241 = vmatprep.subr.mxu0 0.0
    %242 = vmatpush1.msra.mxu0 0.0
    %243 = vmatprep.mubr.f32.mxu0 0.0
    %v244 = vand.u32 %v83, 4294901760
    %245 = vmatmul.mubr.f32.gmra.mrb[0].mxu0 %v244
    %v246 = vpop.f32.mrb[0].mxu0
    %v247 = vadd.f32 %v161, %v246
    %v248 = vpop.f32.mrb[0].mxu0
    %249 = vmatprep.mubr.f32.mxu0 0.0
    %v250 = vand.u32 %v86, 4294901760
    %251 = vmatmul.mubr.f32.gmra.mrb[0].mxu0 %v250
    %v252 = vpop.f32.mrb[0].mxu0
    %v253 = vadd.f32 %v171, %v252
    %v254 = vpop.f32.mrb[0].mxu0
    %255 = vdwg.mxu0
    %256 = vmatprep.subr.mxu0 0.0
    %v257 = vand.u32 %v41, 4294901760
    %v258 = vsub.f32 %v41, %v257
    %259 = vmatpush1.msra.mxu0 %v258
    %260 = vmatprep.subr.mxu0 0.0
    %261 = vmatpush1.msra.mxu0 0.0
    %262 = vmatprep.subr.mxu0 0.0
    %263 = vmatpush1.msra.mxu0 0.0
    %264 = vmatprep.subr.mxu0 0.0
    %265 = vmatpush1.msra.mxu0 0.0
    %266 = vmatprep.subr.mxu0 0.0
    %267 = vmatpush1.msra.mxu0 0.0
    %268 = vmatprep.subr.mxu0 0.0
    %269 = vmatpush1.msra.mxu0 0.0
    %270 = vmatprep.subr.mxu0 0.0
    %271 = vmatpush1.msra.mxu0 0.0
    %272 = vmatprep.subr.mxu0 0.0
    %273 = vmatpush1.msra.mxu0 0.0
    %274 = vmatprep.subr.mxu0 0.0
    %275 = vmatpush1.msra.mxu0 0.0
    %276 = vmatprep.subr.mxu0 0.0
    %277 = vmatpush1.msra.mxu0 0.0
    %278 = vmatprep.subr.mxu0 0.0
    %279 = vmatpush1.msra.mxu0 0.0
    %280 = vmatprep.subr.mxu0 0.0
    %281 = vmatpush1.msra.mxu0 0.0
    %282 = vmatprep.subr.mxu0 0.0
    %283 = vmatpush1.msra.mxu0 0.0
    %284 = vmatprep.subr.mxu0 0.0
    %285 = vmatpush1.msra.mxu0 0.0
    %286 = vmatprep.subr.mxu0 0.0
    %287 = vmatpush1.msra.mxu0 0.0
    %288 = vmatprep.subr.mxu0 0.0
    %289 = vmatpush1.msra.mxu0 0.0
    %290 = vmatprep.subr.mxu0 0.0
    %291 = vmatpush1.msra.mxu0 0.0
    %292 = vmatprep.subr.mxu0 0.0
    %293 = vmatpush1.msra.mxu0 0.0
    %294 = vmatprep.subr.mxu0 0.0
    %295 = vmatpush1.msra.mxu0 0.0
    %296 = vmatprep.subr.mxu0 0.0
    %297 = vmatpush1.msra.mxu0 0.0
    %298 = vmatprep.subr.mxu0 0.0
    %299 = vmatpush1.msra.mxu0 0.0
    %300 = vmatprep.subr.mxu0 0.0
    %301 = vmatpush1.msra.mxu0 0.0
    %302 = vmatprep.subr.mxu0 0.0
    %303 = vmatpush1.msra.mxu0 0.0
    %304 = vmatprep.subr.mxu0 0.0
    %305 = vmatpush1.msra.mxu0 0.0
    %306 = vmatprep.subr.mxu0 0.0
    %307 = vmatpush1.msra.mxu0 0.0
    %308 = vmatprep.subr.mxu0 0.0
    %309 = vmatpush1.msra.mxu0 0.0
    %310 = vmatprep.subr.mxu0 0.0
    %311 = vmatpush1.msra.mxu0 0.0
    %312 = vmatprep.subr.mxu0 0.0
    %313 = vmatpush1.msra.mxu0 0.0
    %314 = vmatprep.subr.mxu0 0.0
    %315 = vmatpush1.msra.mxu0 0.0
    %316 = vmatprep.subr.mxu0 0.0
    %317 = vmatpush1.msra.mxu0 0.0
    %318 = vmatprep.subr.mxu0 0.0
    %319 = vmatpush1.msra.mxu0 0.0
    %320 = vmatprep.subr.mxu0 0.0
    %321 = vmatpush1.msra.mxu0 0.0
    %322 = vmatprep.mubr.f32.mxu0 0.0
    %v323 = vand.u32 %v83, 4294901760
    %v324 = vsub.f32 %v83, %v323
    %325 = vmatmul.mubr.f32.gmra.mrb[0].mxu0 %v324
    %v326 = vpop.f32.mrb[0].mxu0
    %v327 = vadd.f32 %v247, %v326
    %v328 = vpop.f32.mrb[0].mxu0
    %329 = vmatprep.mubr.f32.mxu0 0.0
    %v330 = vand.u32 %v86, 4294901760
    %v331 = vsub.f32 %v86, %v330
    %332 = vmatmul.mubr.f32.gmra.mrb[0].mxu0 %v331
    %v333 = vpop.f32.mrb[0].mxu0
    %v334 = vadd.f32 %v253, %v333
    %v335 = vpop.f32.mrb[0].mxu0
    %336 = vdwg.mxu0
    %337 = vmatprep.subr.mxu0 0.0
    %v338 = vand.u32 %v41, 4294901760
    %339 = vmatpush1.msra.mxu0 %v338
    %340 = vmatprep.subr.mxu0 0.0
    %341 = vmatpush1.msra.mxu0 0.0
    %342 = vmatprep.subr.mxu0 0.0
    %343 = vmatpush1.msra.mxu0 0.0
    %344 = vmatprep.subr.mxu0 0.0
    %345 = vmatpush1.msra.mxu0 0.0
    %346 = vmatprep.subr.mxu0 0.0
    %347 = vmatpush1.msra.mxu0 0.0
    %348 = vmatprep.subr.mxu0 0.0
    %349 = vmatpush1.msra.mxu0 0.0
    %350 = vmatprep.subr.mxu0 0.0
    %351 = vmatpush1.msra.mxu0 0.0
    %352 = vmatprep.subr.mxu0 0.0
    %353 = vmatpush1.msra.mxu0 0.0
    %354 = vmatprep.subr.mxu0 0.0
    %355 = vmatpush1.msra.mxu0 0.0
    %356 = vmatprep.subr.mxu0 0.0
    %357 = vmatpush1.msra.mxu0 0.0
    %358 = vmatprep.subr.mxu0 0.0
    %359 = vmatpush1.msra.mxu0 0.0
    %360 = vmatprep.subr.mxu0 0.0
    %361 = vmatpush1.msra.mxu0 0.0
    %362 = vmatprep.subr.mxu0 0.0
    %363 = vmatpush1.msra.mxu0 0.0
    %364 = vmatprep.subr.mxu0 0.0
    %365 = vmatpush1.msra.mxu0 0.0
    %366 = vmatprep.subr.mxu0 0.0
    %367 = vmatpush1.msra.mxu0 0.0
    %368 = vmatprep.subr.mxu0 0.0
    %369 = vmatpush1.msra.mxu0 0.0
    %370 = vmatprep.subr.mxu0 0.0
    %371 = vmatpush1.msra.mxu0 0.0
    %372 = vmatprep.subr.mxu0 0.0
    %373 = vmatpush1.msra.mxu0 0.0
    %374 = vmatprep.subr.mxu0 0.0
    %375 = vmatpush1.msra.mxu0 0.0
    %376 = vmatprep.subr.mxu0 0.0
    %377 = vmatpush1.msra.mxu0 0.0
    %378 = vmatprep.subr.mxu0 0.0
    %379 = vmatpush1.msra.mxu0 0.0
    %380 = vmatprep.subr.mxu0 0.0
    %381 = vmatpush1.msra.mxu0 0.0
    %382 = vmatprep.subr.mxu0 0.0
    %383 = vmatpush1.msra.mxu0 0.0
    %384 = vmatprep.subr.mxu0 0.0
    %385 = vmatpush1.msra.mxu0 0.0
    %386 = vmatprep.subr.mxu0 0.0
    %387 = vmatpush1.msra.mxu0 0.0
    %388 = vmatprep.subr.mxu0 0.0
    %389 = vmatpush1.msra.mxu0 0.0
    %390 = vmatprep.subr.mxu0 0.0
    %391 = vmatpush1.msra.mxu0 0.0
    %392 = vmatprep.subr.mxu0 0.0
    %393 = vmatpush1.msra.mxu0 0.0
    %394 = vmatprep.subr.mxu0 0.0
    %395 = vmatpush1.msra.mxu0 0.0
    %396 = vmatprep.subr.mxu0 0.0
    %397 = vmatpush1.msra.mxu0 0.0
    %398 = vmatprep.subr.mxu0 0.0
    %399 = vmatpush1.msra.mxu0 0.0
    %400 = vmatprep.subr.mxu0 0.0
    %401 = vmatpush1.msra.mxu0 0.0
    %402 = vmatprep.mubr.f32.mxu0 0.0
    %v403 = vand.u32 %v83, 4294901760
    %v404 = vsub.f32 %v83, %v403
    %v405 = vand.u32 %v404, 4294901760
    %406 = vmatmul.mubr.f32.gmra.mrb[0].mxu0 %v405
    %v407 = vpop.f32.mrb[0].mxu0
    %v408 = vadd.f32 %v327, %v407
    %v409 = vpop.f32.mrb[0].mxu0
    %410 = vmatprep.mubr.f32.mxu0 0.0
    %v411 = vand.u32 %v86, 4294901760
    %v412 = vsub.f32 %v86, %v411
    %v413 = vand.u32 %v412, 4294901760
    %414 = vmatmul.mubr.f32.gmra.mrb[0].mxu0 %v413
    %v415 = vpop.f32.mrb[0].mxu0
    %v416 = vadd.f32 %v334, %v415
    %v417 = vpop.f32.mrb[0].mxu0
    %418 = vdwg.mxu0
    %419 = vmatprep.subr.mxu0 0.0
    %v420 = vand.u32 %v41, 4294901760
    %v421 = vsub.f32 %v41, %v420
    %v422 = vand.u32 %v421, 4294901760
    %423 = vmatpush1.msra.mxu0 %v422
    %424 = vmatprep.subr.mxu0 0.0
    %425 = vmatpush1.msra.mxu0 0.0
    %426 = vmatprep.subr.mxu0 0.0
    %427 = vmatpush1.msra.mxu0 0.0
    %428 = vmatprep.subr.mxu0 0.0
    %429 = vmatpush1.msra.mxu0 0.0
    %430 = vmatprep.subr.mxu0 0.0
    %431 = vmatpush1.msra.mxu0 0.0
    %432 = vmatprep.subr.mxu0 0.0
    %433 = vmatpush1.msra.mxu0 0.0
    %434 = vmatprep.subr.mxu0 0.0
    %435 = vmatpush1.msra.mxu0 0.0
    %436 = vmatprep.subr.mxu0 0.0
    %437 = vmatpush1.msra.mxu0 0.0
    %438 = vmatprep.subr.mxu0 0.0
    %439 = vmatpush1.msra.mxu0 0.0
    %440 = vmatprep.subr.mxu0 0.0
    %441 = vmatpush1.msra.mxu0 0.0
    %442 = vmatprep.subr.mxu0 0.0
    %443 = vmatpush1.msra.mxu0 0.0
    %444 = vmatprep.subr.mxu0 0.0
    %445 = vmatpush1.msra.mxu0 0.0
    %446 = vmatprep.subr.mxu0 0.0
    %447 = vmatpush1.msra.mxu0 0.0
    %448 = vmatprep.subr.mxu0 0.0
    %449 = vmatpush1.msra.mxu0 0.0
    %450 = vmatprep.subr.mxu0 0.0
    %451 = vmatpush1.msra.mxu0 0.0
    %452 = vmatprep.subr.mxu0 0.0
    %453 = vmatpush1.msra.mxu0 0.0
    %454 = vmatprep.subr.mxu0 0.0
    %455 = vmatpush1.msra.mxu0 0.0
    %456 = vmatprep.subr.mxu0 0.0
    %457 = vmatpush1.msra.mxu0 0.0
    %458 = vmatprep.subr.mxu0 0.0
    %459 = vmatpush1.msra.mxu0 0.0
    %460 = vmatprep.subr.mxu0 0.0
    %461 = vmatpush1.msra.mxu0 0.0
    %462 = vmatprep.subr.mxu0 0.0
    %463 = vmatpush1.msra.mxu0 0.0
    %464 = vmatprep.subr.mxu0 0.0
    %465 = vmatpush1.msra.mxu0 0.0
    %466 = vmatprep.subr.mxu0 0.0
    %467 = vmatpush1.msra.mxu0 0.0
    %468 = vmatprep.subr.mxu0 0.0
    %469 = vmatpush1.msra.mxu0 0.0
    %470 = vmatprep.subr.mxu0 0.0
    %471 = vmatpush1.msra.mxu0 0.0
    %472 = vmatprep.subr.mxu0 0.0
    %473 = vmatpush1.msra.mxu0 0.0
    %474 = vmatprep.subr.mxu0 0.0
    %475 = vmatpush1.msra.mxu0 0.0
    %476 = vmatprep.subr.mxu0 0.0
    %477 = vmatpush1.msra.mxu0 0.0
    %478 = vmatprep.subr.mxu0 0.0
    %479 = vmatpush1.msra.mxu0 0.0
    %480 = vmatprep.subr.mxu0 0.0
    %481 = vmatpush1.msra.mxu0 0.0
    %482 = vmatprep.subr.mxu0 0.0
    %483 = vmatpush1.msra.mxu0 0.0
    %484 = vmatprep.subr.mxu0 0.0
    %485 = vmatpush1.msra.mxu0 0.0
    %486 = vmatprep.mubr.f32.mxu0 0.0
    %v487 = vand.u32 %v83, 4294901760
    %488 = vmatmul.mubr.f32.gmra.mrb[0].mxu0 %v487
    %v489 = vpop.f32.mrb[0].mxu0
    %v490 = vadd.f32 %v408, %v489
    %v491 = vpop.f32.mrb[0].mxu0
    %492 = vmatprep.mubr.f32.mxu0 0.0
    %v493 = vand.u32 %v86, 4294901760
    %494 = vmatmul.mubr.f32.gmra.mrb[0].mxu0 %v493
    %v495 = vpop.f32.mrb[0].mxu0
    %v496 = vadd.f32 %v416, %v495
    %v497 = vpop.f32.mrb[0].mxu0
    %498 = vdwg.mxu0
    %499 = vmatprep.subr.mxu0 0.0
    %v500 = vand.u32 %v41, 4294901760
    %501 = vmatpush1.msra.mxu0 %v500
    %502 = vmatprep.subr.mxu0 0.0
    %503 = vmatpush1.msra.mxu0 0.0
    %504 = vmatprep.subr.mxu0 0.0
    %505 = vmatpush1.msra.mxu0 0.0
    %506 = vmatprep.subr.mxu0 0.0
    %507 = vmatpush1.msra.mxu0 0.0
    %508 = vmatprep.subr.mxu0 0.0
    %509 = vmatpush1.msra.mxu0 0.0
    %510 = vmatprep.subr.mxu0 0.0
    %511 = vmatpush1.msra.mxu0 0.0
    %512 = vmatprep.subr.mxu0 0.0
    %513 = vmatpush1.msra.mxu0 0.0
    %514 = vmatprep.subr.mxu0 0.0
    %515 = vmatpush1.msra.mxu0 0.0
    %516 = vmatprep.subr.mxu0 0.0
    %517 = vmatpush1.msra.mxu0 0.0
    %518 = vmatprep.subr.mxu0 0.0
    %519 = vmatpush1.msra.mxu0 0.0
    %520 = vmatprep.subr.mxu0 0.0
    %521 = vmatpush1.msra.mxu0 0.0
    %522 = vmatprep.subr.mxu0 0.0
    %523 = vmatpush1.msra.mxu0 0.0
    %524 = vmatprep.subr.mxu0 0.0
    %525 = vmatpush1.msra.mxu0 0.0
    %526 = vmatprep.subr.mxu0 0.0
    %527 = vmatpush1.msra.mxu0 0.0
    %528 = vmatprep.subr.mxu0 0.0
    %529 = vmatpush1.msra.mxu0 0.0
    %530 = vmatprep.subr.mxu0 0.0
    %531 = vmatpush1.msra.mxu0 0.0
    %532 = vmatprep.subr.mxu0 0.0
    %533 = vmatpush1.msra.mxu0 0.0
    %534 = vmatprep.subr.mxu0 0.0
    %535 = vmatpush1.msra.mxu0 0.0
    %536 = vmatprep.subr.mxu0 0.0
    %537 = vmatpush1.msra.mxu0 0.0
    %538 = vmatprep.subr.mxu0 0.0
    %539 = vmatpush1.msra.mxu0 0.0
    %540 = vmatprep.subr.mxu0 0.0
    %541 = vmatpush1.msra.mxu0 0.0
    %542 = vmatprep.subr.mxu0 0.0
    %543 = vmatpush1.msra.mxu0 0.0
    %544 = vmatprep.subr.mxu0 0.0
    %545 = vmatpush1.msra.mxu0 0.0
    %546 = vmatprep.subr.mxu0 0.0
    %547 = vmatpush1.msra.mxu0 0.0
    %548 = vmatprep.subr.mxu0 0.0
    %549 = vmatpush1.msra.mxu0 0.0
    %550 = vmatprep.subr.mxu0 0.0
    %551 = vmatpush1.msra.mxu0 0.0
    %552 = vmatprep.subr.mxu0 0.0
    %553 = vmatpush1.msra.mxu0 0.0
    %554 = vmatprep.subr.mxu0 0.0
    %555 = vmatpush1.msra.mxu0 0.0
    %556 = vmatprep.subr.mxu0 0.0
    %557 = vmatpush1.msra.mxu0 0.0
    %558 = vmatprep.subr.mxu0 0.0
    %559 = vmatpush1.msra.mxu0 0.0
    %560 = vmatprep.subr.mxu0 0.0
    %561 = vmatpush1.msra.mxu0 0.0
    %562 = vmatprep.subr.mxu0 0.0
    %563 = vmatpush1.msra.mxu0 0.0
    %564 = vmatprep.mubr.f32.mxu0 0.0
    %v565 = vand.u32 %v83, 4294901760
    %566 = vmatmul.mubr.f32.gmra.mrb[0].mxu0 %v565
    %v567 = vpop.f32.mrb[0].mxu0
    %v568 = vadd.f32 %v490, %v567
    %v569 = vpop.f32.mrb[0].mxu0
    %570 = vmatprep.mubr.f32.mxu0 0.0
    %v571 = vand.u32 %v86, 4294901760
    %572 = vmatmul.mubr.f32.gmra.mrb[0].mxu0 %v571
    %v573 = vpop.f32.mrb[0].mxu0
    %v574 = vadd.f32 %v496, %v573
    %v575 = vpop.f32.mrb[0].mxu0
    %576 = vdwg.mxu0
    %v577 = vtanh.pop %v568
    %v578 = vtanh.pop %v574
    %v579 = vld [vmem:[#allocation2] sm:$0xff]
    %v580 = vld [vmem:[#allocation2 + $0x8] sm:$0xff]
    %v581 = vld [vmem:[#allocation2 + $0x10] sm:$0xff]
    %v582 = vld [vmem:[#allocation2 + $0x18] sm:$0xff]
    %v583 = vld [vmem:[%s4] sm:$0x1]
    %v585 = vlaneseq
    %v586 = vshrl.u32 %v585, 7
    %v587 = vsub.s32 0, %v586
    %v588 = vrot.slane %v583, %v587
    %vm590 = vcmask 261120
    %v592 = vsel %vm590, %v577, 0
    %v595 = vsel %vm590, %v578, 0
    %597 = vmatprep.subr.mxu0 0.0
    %v598 = vand.u32 %v579, 4294901760
    %599 = vmatpush1.msra.mxu0 %v598
    %600 = vmatprep.subr.mxu0 0.0
    %v601 = vand.u32 %v580, 4294901760
    %602 = vmatpush1.msra.mxu0 %v601
    %603 = vmatprep.subr.mxu0 0.0
    %v604 = vand.u32 %v581, 4294901760
    %605 = vmatpush1.msra.mxu0 %v604
    %606 = vmatprep.subr.mxu0 0.0
    %v607 = vand.u32 %v582, 4294901760
    %608 = vmatpush1.msra.mxu0 %v607
    %609 = vmatprep.subr.mxu0 0.0
    %610 = vmatpush1.msra.mxu0 0.0
    %611 = vmatprep.subr.mxu0 0.0
    %612 = vmatpush1.msra.mxu0 0.0
    %613 = vmatprep.subr.mxu0 0.0
    %614 = vmatpush1.msra.mxu0 0.0
    %615 = vmatprep.subr.mxu0 0.0
    %616 = vmatpush1.msra.mxu0 0.0
    %617 = vmatprep.subr.mxu0 0.0
    %618 = vmatpush1.msra.mxu0 0.0
    %619 = vmatprep.subr.mxu0 0.0
    %620 = vmatpush1.msra.mxu0 0.0
    %621 = vmatprep.subr.mxu0 0.0
    %622 = vmatpush1.msra.mxu0 0.0
    %623 = vmatprep.subr.mxu0 0.0
    %624 = vmatpush1.msra.mxu0 0.0
    %625 = vmatprep.subr.mxu0 0.0
    %626 = vmatpush1.msra.mxu0 0.0
    %627 = vmatprep.subr.mxu0 0.0
    %628 = vmatpush1.msra.mxu0 0.0
    %629 = vmatprep.subr.mxu0 0.0
    %630 = vmatpush1.msra.mxu0 0.0
    %631 = vmatprep.subr.mxu0 0.0
    %632 = vmatpush1.msra.mxu0 0.0
    %633 = vmatprep.subr.mxu0 0.0
    %634 = vmatpush1.msra.mxu0 0.0
    %635 = vmatprep.subr.mxu0 0.0
    %636 = vmatpush1.msra.mxu0 0.0
    %637 = vmatprep.subr.mxu0 0.0
    %638 = vmatpush1.msra.mxu0 0.0
    %639 = vmatprep.subr.mxu0 0.0
    %640 = vmatpush1.msra.mxu0 0.0
    %641 = vmatprep.subr.mxu0 0.0
    %642 = vmatpush1.msra.mxu0 0.0
    %643 = vmatprep.subr.mxu0 0.0
    %644 = vmatpush1.msra.mxu0 0.0
    %645 = vmatprep.subr.mxu0 0.0
    %646 = vmatpush1.msra.mxu0 0.0
    %647 = vmatprep.subr.mxu0 0.0
    %648 = vmatpush1.msra.mxu0 0.0
    %649 = vmatprep.subr.mxu0 0.0
    %650 = vmatpush1.msra.mxu0 0.0
    %651 = vmatprep.subr.mxu0 0.0
    %652 = vmatpush1.msra.mxu0 0.0
    %653 = vmatprep.subr.mxu0 0.0
    %654 = vmatpush1.msra.mxu0 0.0
    %655 = vmatprep.subr.mxu0 0.0
    %656 = vmatpush1.msra.mxu0 0.0
    %657 = vmatprep.subr.mxu0 0.0
    %658 = vmatpush1.msra.mxu0 0.0
    %659 = vmatprep.subr.mxu0 0.0
    %660 = vmatpush1.msra.mxu0 0.0
    %661 = vmatprep.subr.mxu0 0.0
    %662 = vmatpush1.msra.mxu0 0.0
    %663 = vmatprep.subr.mxu0 0.0
    %664 = vmatpush1.msra.mxu0 0.0
    %665 = vmatprep.mubr.f32.mxu0 0.0
    %v666 = vand.u32 %v592, 4294901760
    %v667 = vsub.f32 %v592, %v666
    %v668 = vand.u32 %v667, 4294901760
    %v669 = vsub.f32 %v667, %v668
    %v670 = vand.u32 %v669, 4294901760
    %671 = vmatmul.mubr.f32.gmra.mrb[0].mxu0 %v670
    %v672 = vpop.f32.mrb[0].mxu0
    %v673 = vadd.f32 %v588, %v672
    %v674 = vpop.f32.mrb[0].mxu0
    %675 = vmatprep.mubr.f32.mxu0 0.0
    %v676 = vand.u32 %v595, 4294901760
    %v677 = vsub.f32 %v595, %v676
    %v678 = vand.u32 %v677, 4294901760
    %v679 = vsub.f32 %v677, %v678
    %v680 = vand.u32 %v679, 4294901760
    %681 = vmatmul.mubr.f32.gmra.mrb[0].mxu0 %v680
    %v682 = vpop.f32.mrb[0].mxu0
    %v683 = vadd.f32 %v588, %v682
    %v684 = vpop.f32.mrb[0].mxu0
    %685 = vdwg.mxu0
    %686 = vmatprep.subr.mxu0 0.0
    %v687 = vand.u32 %v579, 4294901760
    %v688 = vsub.f32 %v579, %v687
    %v689 = vand.u32 %v688, 4294901760
    %v690 = vsub.f32 %v688, %v689
    %v691 = vand.u32 %v690, 4294901760
    %692 = vmatpush1.msra.mxu0 %v691
    %693 = vmatprep.subr.mxu0 0.0
    %v694 = vand.u32 %v580, 4294901760
    %v695 = vsub.f32 %v580, %v694
    %v696 = vand.u32 %v695, 4294901760
    %v697 = vsub.f32 %v695, %v696
    %v698 = vand.u32 %v697, 4294901760
    %699 = vmatpush1.msra.mxu0 %v698
    %700 = vmatprep.subr.mxu0 0.0
    %v701 = vand.u32 %v581, 4294901760
    %v702 = vsub.f32 %v581, %v701
    %v703 = vand.u32 %v702, 4294901760
    %v704 = vsub.f32 %v702, %v703
    %v705 = vand.u32 %v704, 4294901760
    %706 = vmatpush1.msra.mxu0 %v705
    %707 = vmatprep.subr.mxu0 0.0
    %v708 = vand.u32 %v582, 4294901760
    %v709 = vsub.f32 %v582, %v708
    %v710 = vand.u32 %v709, 4294901760
    %v711 = vsub.f32 %v709, %v710
    %v712 = vand.u32 %v711, 4294901760
    %713 = vmatpush1.msra.mxu0 %v712
    %714 = vmatprep.subr.mxu0 0.0
    %715 = vmatpush1.msra.mxu0 0.0
    %716 = vmatprep.subr.mxu0 0.0
    %717 = vmatpush1.msra.mxu0 0.0
    %718 = vmatprep.subr.mxu0 0.0
    %719 = vmatpush1.msra.mxu0 0.0
    %720 = vmatprep.subr.mxu0 0.0
    %721 = vmatpush1.msra.mxu0 0.0
    %722 = vmatprep.subr.mxu0 0.0
    %723 = vmatpush1.msra.mxu0 0.0
    %724 = vmatprep.subr.mxu0 0.0
    %725 = vmatpush1.msra.mxu0 0.0
    %726 = vmatprep.subr.mxu0 0.0
    %727 = vmatpush1.msra.mxu0 0.0
    %728 = vmatprep.subr.mxu0 0.0
    %729 = vmatpush1.msra.mxu0 0.0
    %730 = vmatprep.subr.mxu0 0.0
    %731 = vmatpush1.msra.mxu0 0.0
    %732 = vmatprep.subr.mxu0 0.0
    %733 = vmatpush1.msra.mxu0 0.0
    %734 = vmatprep.subr.mxu0 0.0
    %735 = vmatpush1.msra.mxu0 0.0
    %736 = vmatprep.subr.mxu0 0.0
    %737 = vmatpush1.msra.mxu0 0.0
    %738 = vmatprep.subr.mxu0 0.0
    %739 = vmatpush1.msra.mxu0 0.0
    %740 = vmatprep.subr.mxu0 0.0
    %741 = vmatpush1.msra.mxu0 0.0
    %742 = vmatprep.subr.mxu0 0.0
    %743 = vmatpush1.msra.mxu0 0.0
    %744 = vmatprep.subr.mxu0 0.0
    %745 = vmatpush1.msra.mxu0 0.0
    %746 = vmatprep.subr.mxu0 0.0
    %747 = vmatpush1.msra.mxu0 0.0
    %748 = vmatprep.subr.mxu0 0.0
    %749 = vmatpush1.msra.mxu0 0.0
    %750 = vmatprep.subr.mxu0 0.0
    %751 = vmatpush1.msra.mxu0 0.0
    %752 = vmatprep.subr.mxu0 0.0
    %753 = vmatpush1.msra.mxu0 0.0
    %754 = vmatprep.subr.mxu0 0.0
    %755 = vmatpush1.msra.mxu0 0.0
    %756 = vmatprep.subr.mxu0 0.0
    %757 = vmatpush1.msra.mxu0 0.0
    %758 = vmatprep.subr.mxu0 0.0
    %759 = vmatpush1.msra.mxu0 0.0
    %760 = vmatprep.subr.mxu0 0.0
    %761 = vmatpush1.msra.mxu0 0.0
    %762 = vmatprep.subr.mxu0 0.0
    %763 = vmatpush1.msra.mxu0 0.0
    %764 = vmatprep.subr.mxu0 0.0
    %765 = vmatpush1.msra.mxu0 0.0
    %766 = vmatprep.subr.mxu0 0.0
    %767 = vmatpush1.msra.mxu0 0.0
    %768 = vmatprep.subr.mxu0 0.0
    %769 = vmatpush1.msra.mxu0 0.0
    %770 = vmatprep.mubr.f32.mxu0 0.0
    %v771 = vand.u32 %v592, 4294901760
    %772 = vmatmul.mubr.f32.gmra.mrb[0].mxu0 %v771
    %v773 = vpop.f32.mrb[0].mxu0
    %v774 = vadd.f32 %v673, %v773
    %v775 = vpop.f32.mrb[0].mxu0
    %776 = vmatprep.mubr.f32.mxu0 0.0
    %v777 = vand.u32 %v595, 4294901760
    %778 = vmatmul.mubr.f32.gmra.mrb[0].mxu0 %v777
    %v779 = vpop.f32.mrb[0].mxu0
    %v780 = vadd.f32 %v683, %v779
    %v781 = vpop.f32.mrb[0].mxu0
    %782 = vdwg.mxu0
    %783 = vmatprep.subr.mxu0 0.0
    %v784 = vand.u32 %v579, 4294901760
    %v785 = vsub.f32 %v579, %v784
    %786 = vmatpush1.msra.mxu0 %v785
    %787 = vmatprep.subr.mxu0 0.0
    %v788 = vand.u32 %v580, 4294901760
    %v789 = vsub.f32 %v580, %v788
    %790 = vmatpush1.msra.mxu0 %v789
    %791 = vmatprep.subr.mxu0 0.0
    %v792 = vand.u32 %v581, 4294901760
    %v793 = vsub.f32 %v581, %v792
    %794 = vmatpush1.msra.mxu0 %v793
    %795 = vmatprep.subr.mxu0 0.0
    %v796 = vand.u32 %v582, 4294901760
    %v797 = vsub.f32 %v582, %v796
    %798 = vmatpush1.msra.mxu0 %v797
    %799 = vmatprep.subr.mxu0 0.0
    %800 = vmatpush1.msra.mxu0 0.0
    %801 = vmatprep.subr.mxu0 0.0
    %802 = vmatpush1.msra.mxu0 0.0
    %803 = vmatprep.subr.mxu0 0.0
    %804 = vmatpush1.msra.mxu0 0.0
    %805 = vmatprep.subr.mxu0 0.0
    %806 = vmatpush1.msra.mxu0 0.0
    %807 = vmatprep.subr.mxu0 0.0
    %808 = vmatpush1.msra.mxu0 0.0
    %809 = vmatprep.subr.mxu0 0.0
    %810 = vmatpush1.msra.mxu0 0.0
    %811 = vmatprep.subr.mxu0 0.0
    %812 = vmatpush1.msra.mxu0 0.0
    %813 = vmatprep.subr.mxu0 0.0
    %814 = vmatpush1.msra.mxu0 0.0
    %815 = vmatprep.subr.mxu0 0.0
    %816 = vmatpush1.msra.mxu0 0.0
    %817 = vmatprep.subr.mxu0 0.0
    %818 = vmatpush1.msra.mxu0 0.0
    %819 = vmatprep.subr.mxu0 0.0
    %820 = vmatpush1.msra.mxu0 0.0
    %821 = vmatprep.subr.mxu0 0.0
    %822 = vmatpush1.msra.mxu0 0.0
    %823 = vmatprep.subr.mxu0 0.0
    %824 = vmatpush1.msra.mxu0 0.0
    %825 = vmatprep.subr.mxu0 0.0
    %826 = vmatpush1.msra.mxu0 0.0
    %827 = vmatprep.subr.mxu0 0.0
    %828 = vmatpush1.msra.mxu0 0.0
    %829 = vmatprep.subr.mxu0 0.0
    %830 = vmatpush1.msra.mxu0 0.0
    %831 = vmatprep.subr.mxu0 0.0
    %832 = vmatpush1.msra.mxu0 0.0
    %833 = vmatprep.subr.mxu0 0.0
    %834 = vmatpush1.msra.mxu0 0.0
    %835 = vmatprep.subr.mxu0 0.0
    %836 = vmatpush1.msra.mxu0 0.0
    %837 = vmatprep.subr.mxu0 0.0
    %838 = vmatpush1.msra.mxu0 0.0
    %839 = vmatprep.subr.mxu0 0.0
    %840 = vmatpush1.msra.mxu0 0.0
    %841 = vmatprep.subr.mxu0 0.0
    %842 = vmatpush1.msra.mxu0 0.0
    %843 = vmatprep.subr.mxu0 0.0
    %844 = vmatpush1.msra.mxu0 0.0
    %845 = vmatprep.subr.mxu0 0.0
    %846 = vmatpush1.msra.mxu0 0.0
    %847 = vmatprep.subr.mxu0 0.0
    %848 = vmatpush1.msra.mxu0 0.0
    %849 = vmatprep.subr.mxu0 0.0
    %850 = vmatpush1.msra.mxu0 0.0
    %851 = vmatprep.subr.mxu0 0.0
    %852 = vmatpush1.msra.mxu0 0.0
    %853 = vmatprep.subr.mxu0 0.0
    %854 = vmatpush1.msra.mxu0 0.0
    %855 = vmatprep.mubr.f32.mxu0 0.0
    %v856 = vand.u32 %v592, 4294901760
    %v857 = vsub.f32 %v592, %v856
    %858 = vmatmul.mubr.f32.gmra.mrb[0].mxu0 %v857
    %v859 = vpop.f32.mrb[0].mxu0
    %v860 = vadd.f32 %v774, %v859
    %v861 = vpop.f32.mrb[0].mxu0
    %862 = vmatprep.mubr.f32.mxu0 0.0
    %v863 = vand.u32 %v595, 4294901760
    %v864 = vsub.f32 %v595, %v863
    %865 = vmatmul.mubr.f32.gmra.mrb[0].mxu0 %v864
    %v866 = vpop.f32.mrb[0].mxu0
    %v867 = vadd.f32 %v780, %v866
    %v868 = vpop.f32.mrb[0].mxu0
    %869 = vdwg.mxu0
    %870 = vmatprep.subr.mxu0 0.0
    %v871 = vand.u32 %v579, 4294901760
    %872 = vmatpush1.msra.mxu0 %v871
    %873 = vmatprep.subr.mxu0 0.0
    %v874 = vand.u32 %v580, 4294901760
    %875 = vmatpush1.msra.mxu0 %v874
    %876 = vmatprep.subr.mxu0 0.0
    %v877 = vand.u32 %v581, 4294901760
    %878 = vmatpush1.msra.mxu0 %v877
    %879 = vmatprep.subr.mxu0 0.0
    %v880 = vand.u32 %v582, 4294901760
    %881 = vmatpush1.msra.mxu0 %v880
    %882 = vmatprep.subr.mxu0 0.0
    %883 = vmatpush1.msra.mxu0 0.0
    %884 = vmatprep.subr.mxu0 0.0
    %885 = vmatpush1.msra.mxu0 0.0
    %886 = vmatprep.subr.mxu0 0.0
    %887 = vmatpush1.msra.mxu0 0.0
    %888 = vmatprep.subr.mxu0 0.0
    %889 = vmatpush1.msra.mxu0 0.0
    %890 = vmatprep.subr.mxu0 0.0
    %891 = vmatpush1.msra.mxu0 0.0
    %892 = vmatprep.subr.mxu0 0.0
    %893 = vmatpush1.msra.mxu0 0.0
    %894 = vmatprep.subr.mxu0 0.0
    %895 = vmatpush1.msra.mxu0 0.0
    %896 = vmatprep.subr.mxu0 0.0
    %897 = vmatpush1.msra.mxu0 0.0
    %898 = vmatprep.subr.mxu0 0.0
    %899 = vmatpush1.msra.mxu0 0.0
    %900 = vmatprep.subr.mxu0 0.0
    %901 = vmatpush1.msra.mxu0 0.0
    %902 = vmatprep.subr.mxu0 0.0
    %903 = vmatpush1.msra.mxu0 0.0
    %904 = vmatprep.subr.mxu0 0.0
    %905 = vmatpush1.msra.mxu0 0.0
    %906 = vmatprep.subr.mxu0 0.0
    %907 = vmatpush1.msra.mxu0 0.0
    %908 = vmatprep.subr.mxu0 0.0
    %909 = vmatpush1.msra.mxu0 0.0
    %910 = vmatprep.subr.mxu0 0.0
    %911 = vmatpush1.msra.mxu0 0.0
    %912 = vmatprep.subr.mxu0 0.0
    %913 = vmatpush1.msra.mxu0 0.0
    %914 = vmatprep.subr.mxu0 0.0
    %915 = vmatpush1.msra.mxu0 0.0
    %916 = vmatprep.subr.mxu0 0.0
    %917 = vmatpush1.msra.mxu0 0.0
    %918 = vmatprep.subr.mxu0 0.0
    %919 = vmatpush1.msra.mxu0 0.0
    %920 = vmatprep.subr.mxu0 0.0
    %921 = vmatpush1.msra.mxu0 0.0
    %922 = vmatprep.subr.mxu0 0.0
    %923 = vmatpush1.msra.mxu0 0.0
    %924 = vmatprep.subr.mxu0 0.0
    %925 = vmatpush1.msra.mxu0 0.0
    %926 = vmatprep.subr.mxu0 0.0
    %927 = vmatpush1.msra.mxu0 0.0
    %928 = vmatprep.subr.mxu0 0.0
    %929 = vmatpush1.msra.mxu0 0.0
    %930 = vmatprep.subr.mxu0 0.0
    %931 = vmatpush1.msra.mxu0 0.0
    %932 = vmatprep.subr.mxu0 0.0
    %933 = vmatpush1.msra.mxu0 0.0
    %934 = vmatprep.subr.mxu0 0.0
    %935 = vmatpush1.msra.mxu0 0.0
    %936 = vmatprep.subr.mxu0 0.0
    %937 = vmatpush1.msra.mxu0 0.0
    %938 = vmatprep.mubr.f32.mxu0 0.0
    %v939 = vand.u32 %v592, 4294901760
    %v940 = vsub.f32 %v592, %v939
    %v941 = vand.u32 %v940, 4294901760
    %942 = vmatmul.mubr.f32.gmra.mrb[0].mxu0 %v941
    %v943 = vpop.f32.mrb[0].mxu0
    %v944 = vadd.f32 %v860, %v943
    %v945 = vpop.f32.mrb[0].mxu0
    %946 = vmatprep.mubr.f32.mxu0 0.0
    %v947 = vand.u32 %v595, 4294901760
    %v948 = vsub.f32 %v595, %v947
    %v949 = vand.u32 %v948, 4294901760
    %950 = vmatmul.mubr.f32.gmra.mrb[0].mxu0 %v949
    %v951 = vpop.f32.mrb[0].mxu0
    %v952 = vadd.f32 %v867, %v951
    %v953 = vpop.f32.mrb[0].mxu0
    %954 = vdwg.mxu0
    %955 = vmatprep.subr.mxu0 0.0
    %v956 = vand.u32 %v579, 4294901760
    %v957 = vsub.f32 %v579, %v956
    %v958 = vand.u32 %v957, 4294901760
    %959 = vmatpush1.msra.mxu0 %v958
    %960 = vmatprep.subr.mxu0 0.0
    %v961 = vand.u32 %v580, 4294901760
    %v962 = vsub.f32 %v580, %v961
    %v963 = vand.u32 %v962, 4294901760
    %964 = vmatpush1.msra.mxu0 %v963
    %965 = vmatprep.subr.mxu0 0.0
    %v966 = vand.u32 %v581, 4294901760
    %v967 = vsub.f32 %v581, %v966
    %v968 = vand.u32 %v967, 4294901760
    %969 = vmatpush1.msra.mxu0 %v968
    %970 = vmatprep.subr.mxu0 0.0
    %v971 = vand.u32 %v582, 4294901760
    %v972 = vsub.f32 %v582, %v971
    %v973 = vand.u32 %v972, 4294901760
    %974 = vmatpush1.msra.mxu0 %v973
    %975 = vmatprep.subr.mxu0 0.0
    %976 = vmatpush1.msra.mxu0 0.0
    %977 = vmatprep.subr.mxu0 0.0
    %978 = vmatpush1.msra.mxu0 0.0
    %979 = vmatprep.subr.mxu0 0.0
    %980 = vmatpush1.msra.mxu0 0.0
    %981 = vmatprep.subr.mxu0 0.0
    %982 = vmatpush1.msra.mxu0 0.0
    %983 = vmatprep.subr.mxu0 0.0
    %984 = vmatpush1.msra.mxu0 0.0
    %985 = vmatprep.subr.mxu0 0.0
    %986 = vmatpush1.msra.mxu0 0.0
    %987 = vmatprep.subr.mxu0 0.0
    %988 = vmatpush1.msra.mxu0 0.0
    %989 = vmatprep.subr.mxu0 0.0
    %990 = vmatpush1.msra.mxu0 0.0
    %991 = vmatprep.subr.mxu0 0.0
    %992 = vmatpush1.msra.mxu0 0.0
    %993 = vmatprep.subr.mxu0 0.0
    %994 = vmatpush1.msra.mxu0 0.0
    %995 = vmatprep.subr.mxu0 0.0
    %996 = vmatpush1.msra.mxu0 0.0
    %997 = vmatprep.subr.mxu0 0.0
    %998 = vmatpush1.msra.mxu0 0.0
    %999 = vmatprep.subr.mxu0 0.0
    %1000 = vmatpush1.msra.mxu0 0.0
    %1001 = vmatprep.subr.mxu0 0.0
    %1002 = vmatpush1.msra.mxu0 0.0
    %1003 = vmatprep.subr.mxu0 0.0
    %1004 = vmatpush1.msra.mxu0 0.0
    %1005 = vmatprep.subr.mxu0 0.0
    %1006 = vmatpush1.msra.mxu0 0.0
    %1007 = vmatprep.subr.mxu0 0.0
    %1008 = vmatpush1.msra.mxu0 0.0
    %1009 = vmatprep.subr.mxu0 0.0
    %1010 = vmatpush1.msra.mxu0 0.0
    %1011 = vmatprep.subr.mxu0 0.0
    %1012 = vmatpush1.msra.mxu0 0.0
    %1013 = vmatprep.subr.mxu0 0.0
    %1014 = vmatpush1.msra.mxu0 0.0
    %1015 = vmatprep.subr.mxu0 0.0
    %1016 = vmatpush1.msra.mxu0 0.0
    %1017 = vmatprep.subr.mxu0 0.0
    %1018 = vmatpush1.msra.mxu0 0.0
    %1019 = vmatprep.subr.mxu0 0.0
    %1020 = vmatpush1.msra.mxu0 0.0
    %1021 = vmatprep.subr.mxu0 0.0
    %1022 = vmatpush1.msra.mxu0 0.0
    %1023 = vmatprep.subr.mxu0 0.0
    %1024 = vmatpush1.msra.mxu0 0.0
    %1025 = vmatprep.subr.mxu0 0.0
    %1026 = vmatpush1.msra.mxu0 0.0
    %1027 = vmatprep.subr.mxu0 0.0
    %1028 = vmatpush1.msra.mxu0 0.0
    %1029 = vmatprep.subr.mxu0 0.0
    %1030 = vmatpush1.msra.mxu0 0.0
    %1031 = vmatprep.mubr.f32.mxu0 0.0
    %v1032 = vand.u32 %v592, 4294901760
    %1033 = vmatmul.mubr.f32.gmra.mrb[0].mxu0 %v1032
    %v1034 = vpop.f32.mrb[0].mxu0
    %v1035 = vadd.f32 %v944, %v1034
    %v1036 = vpop.f32.mrb[0].mxu0
    %1037 = vmatprep.mubr.f32.mxu0 0.0
    %v1038 = vand.u32 %v595, 4294901760
    %1039 = vmatmul.mubr.f32.gmra.mrb[0].mxu0 %v1038
    %v1040 = vpop.f32.mrb[0].mxu0
    %v1041 = vadd.f32 %v952, %v1040
    %v1042 = vpop.f32.mrb[0].mxu0
    %1043 = vdwg.mxu0
    %1044 = vmatprep.subr.mxu0 0.0
    %v1045 = vand.u32 %v579, 4294901760
    %1046 = vmatpush1.msra.mxu0 %v1045
    %1047 = vmatprep.subr.mxu0 0.0
    %v1048 = vand.u32 %v580, 4294901760
    %1049 = vmatpush1.msra.mxu0 %v1048
    %1050 = vmatprep.subr.mxu0 0.0
    %v1051 = vand.u32 %v581, 4294901760
    %1052 = vmatpush1.msra.mxu0 %v1051
    %1053 = vmatprep.subr.mxu0 0.0
    %v1054 = vand.u32 %v582, 4294901760
    %1055 = vmatpush1.msra.mxu0 %v1054
    %1056 = vmatprep.subr.mxu0 0.0
    %1057 = vmatpush1.msra.mxu0 0.0
    %1058 = vmatprep.subr.mxu0 0.0
    %1059 = vmatpush1.msra.mxu0 0.0
    %1060 = vmatprep.subr.mxu0 0.0
    %1061 = vmatpush1.msra.mxu0 0.0
    %1062 = vmatprep.subr.mxu0 0.0
    %1063 = vmatpush1.msra.mxu0 0.0
    %1064 = vmatprep.subr.mxu0 0.0
    %1065 = vmatpush1.msra.mxu0 0.0
    %1066 = vmatprep.subr.mxu0 0.0
    %1067 = vmatpush1.msra.mxu0 0.0
    %1068 = vmatprep.subr.mxu0 0.0
    %1069 = vmatpush1.msra.mxu0 0.0
    %1070 = vmatprep.subr.mxu0 0.0
    %1071 = vmatpush1.msra.mxu0 0.0
    %1072 = vmatprep.subr.mxu0 0.0
    %1073 = vmatpush1.msra.mxu0 0.0
    %1074 = vmatprep.subr.mxu0 0.0
    %1075 = vmatpush1.msra.mxu0 0.0
    %1076 = vmatprep.subr.mxu0 0.0
    %1077 = vmatpush1.msra.mxu0 0.0
    %1078 = vmatprep.subr.mxu0 0.0
    %1079 = vmatpush1.msra.mxu0 0.0
    %1080 = vmatprep.subr.mxu0 0.0
    %1081 = vmatpush1.msra.mxu0 0.0
    %1082 = vmatprep.subr.mxu0 0.0
    %1083 = vmatpush1.msra.mxu0 0.0
    %1084 = vmatprep.subr.mxu0 0.0
    %1085 = vmatpush1.msra.mxu0 0.0
    %1086 = vmatprep.subr.mxu0 0.0
    %1087 = vmatpush1.msra.mxu0 0.0
    %1088 = vmatprep.subr.mxu0 0.0
    %1089 = vmatpush1.msra.mxu0 0.0
    %1090 = vmatprep.subr.mxu0 0.0
    %1091 = vmatpush1.msra.mxu0 0.0
    %1092 = vmatprep.subr.mxu0 0.0
    %1093 = vmatpush1.msra.mxu0 0.0
    %1094 = vmatprep.subr.mxu0 0.0
    %1095 = vmatpush1.msra.mxu0 0.0
    %1096 = vmatprep.subr.mxu0 0.0
    %1097 = vmatpush1.msra.mxu0 0.0
    %1098 = vmatprep.subr.mxu0 0.0
    %1099 = vmatpush1.msra.mxu0 0.0
    %1100 = vmatprep.subr.mxu0 0.0
    %1101 = vmatpush1.msra.mxu0 0.0
    %1102 = vmatprep.subr.mxu0 0.0
    %1103 = vmatpush1.msra.mxu0 0.0
    %1104 = vmatprep.subr.mxu0 0.0
    %1105 = vmatpush1.msra.mxu0 0.0
    %1106 = vmatprep.subr.mxu0 0.0
    %1107 = vmatpush1.msra.mxu0 0.0
    %1108 = vmatprep.subr.mxu0 0.0
    %1109 = vmatpush1.msra.mxu0 0.0
    %1110 = vmatprep.subr.mxu0 0.0
    %1111 = vmatpush1.msra.mxu0 0.0
    %1112 = vmatprep.mubr.f32.mxu0 0.0
    %v1113 = vand.u32 %v592, 4294901760
    %1114 = vmatmul.mubr.f32.gmra.mrb[0].mxu0 %v1113
    %v1115 = vpop.f32.mrb[0].mxu0
    %v1116 = vadd.f32 %v1035, %v1115
    %v1117 = vpop.f32.mrb[0].mxu0
    %1118 = vmatprep.mubr.f32.mxu0 0.0
    %v1119 = vand.u32 %v595, 4294901760
    %1120 = vmatmul.mubr.f32.gmra.mrb[0].mxu0 %v1119
    %v1121 = vpop.f32.mrb[0].mxu0
    %v1122 = vadd.f32 %v1041, %v1121
    %v1123 = vpop.f32.mrb[0].mxu0
    %1124 = vdwg.mxu0
    %v1125 = vtanh.pop %v1116
    %v1126 = vtanh.pop %v1122
    %s1127 = scalar_lea.vmem [#allocation2], 32
    %v1128 = vld [vmem:[%s1127] sm:$0xff]
    %v1129 = vld [vmem:[%s1127 + $0x8] sm:$0xff]
    %v1130 = vld [vmem:[%s1127 + $0x10] sm:$0xff]
    %v1131 = vld [vmem:[%s1127 + $0x18] sm:$0xff]
    %s1132 = scalar_lea.vmem %s4, 1
    %v1133 = vld [vmem:[%s1132] sm:$0x1]
    %v1135 = vlaneseq
    %v1136 = vshrl.u32 %v1135, 7
    %v1137 = vsub.s32 0, %v1136
    %v1138 = vrot.slane %v1133, %v1137
    %v1141 = vsel %vm590, %v1125, 0
    %v1144 = vsel %vm590, %v1126, 0
    %1146 = vmatprep.subr.mxu0 0.0
    %v1147 = vand.u32 %v1128, 4294901760
    %1148 = vmatpush1.msra.mxu0 %v1147
    %1149 = vmatprep.subr.mxu0 0.0
    %v1150 = vand.u32 %v1129, 4294901760
    %1151 = vmatpush1.msra.mxu0 %v1150
    %1152 = vmatprep.subr.mxu0 0.0
    %v1153 = vand.u32 %v1130, 4294901760
    %1154 = vmatpush1.msra.mxu0 %v1153
    %1155 = vmatprep.subr.mxu0 0.0
    %v1156 = vand.u32 %v1131, 4294901760
    %1157 = vmatpush1.msra.mxu0 %v1156
    %1158 = vmatprep.subr.mxu0 0.0
    %1159 = vmatpush1.msra.mxu0 0.0
    %1160 = vmatprep.subr.mxu0 0.0
    %1161 = vmatpush1.msra.mxu0 0.0
    %1162 = vmatprep.subr.mxu0 0.0
    %1163 = vmatpush1.msra.mxu0 0.0
    %1164 = vmatprep.subr.mxu0 0.0
    %1165 = vmatpush1.msra.mxu0 0.0
    %1166 = vmatprep.subr.mxu0 0.0
    %1167 = vmatpush1.msra.mxu0 0.0
    %1168 = vmatprep.subr.mxu0 0.0
    %1169 = vmatpush1.msra.mxu0 0.0
    %1170 = vmatprep.subr.mxu0 0.0
    %1171 = vmatpush1.msra.mxu0 0.0
    %1172 = vmatprep.subr.mxu0 0.0
    %1173 = vmatpush1.msra.mxu0 0.0
    %1174 = vmatprep.subr.mxu0 0.0
    %1175 = vmatpush1.msra.mxu0 0.0
    %1176 = vmatprep.subr.mxu0 0.0
    %1177 = vmatpush1.msra.mxu0 0.0
    %1178 = vmatprep.subr.mxu0 0.0
    %1179 = vmatpush1.msra.mxu0 0.0
    %1180 = vmatprep.subr.mxu0 0.0
    %1181 = vmatpush1.msra.mxu0 0.0
    %1182 = vmatprep.subr.mxu0 0.0
    %1183 = vmatpush1.msra.mxu0 0.0
    %1184 = vmatprep.subr.mxu0 0.0
    %1185 = vmatpush1.msra.mxu0 0.0
    %1186 = vmatprep.subr.mxu0 0.0
    %1187 = vmatpush1.msra.mxu0 0.0
    %1188 = vmatprep.subr.mxu0 0.0
    %1189 = vmatpush1.msra.mxu0 0.0
    %1190 = vmatprep.subr.mxu0 0.0
    %1191 = vmatpush1.msra.mxu0 0.0
    %1192 = vmatprep.subr.mxu0 0.0
    %1193 = vmatpush1.msra.mxu0 0.0
    %1194 = vmatprep.subr.mxu0 0.0
    %1195 = vmatpush1.msra.mxu0 0.0
    %1196 = vmatprep.subr.mxu0 0.0
    %1197 = vmatpush1.msra.mxu0 0.0
    %1198 = vmatprep.subr.mxu0 0.0
    %1199 = vmatpush1.msra.mxu0 0.0
    %1200 = vmatprep.subr.mxu0 0.0
    %1201 = vmatpush1.msra.mxu0 0.0
    %1202 = vmatprep.subr.mxu0 0.0
    %1203 = vmatpush1.msra.mxu0 0.0
    %1204 = vmatprep.subr.mxu0 0.0
    %1205 = vmatpush1.msra.mxu0 0.0
    %1206 = vmatprep.subr.mxu0 0.0
    %1207 = vmatpush1.msra.mxu0 0.0
    %1208 = vmatprep.subr.mxu0 0.0
    %1209 = vmatpush1.msra.mxu0 0.0
    %1210 = vmatprep.subr.mxu0 0.0
    %1211 = vmatpush1.msra.mxu0 0.0
    %1212 = vmatprep.subr.mxu0 0.0
    %1213 = vmatpush1.msra.mxu0 0.0
    %1214 = vmatprep.mubr.f32.mxu0 0.0
    %v1215 = vand.u32 %v1141, 4294901760
    %v1216 = vsub.f32 %v1141, %v1215
    %v1217 = vand.u32 %v1216, 4294901760
    %v1218 = vsub.f32 %v1216, %v1217
    %v1219 = vand.u32 %v1218, 4294901760
    %1220 = vmatmul.mubr.f32.gmra.mrb[0].mxu0 %v1219
    %v1221 = vpop.f32.mrb[0].mxu0
    %v1222 = vadd.f32 %v1138, %v1221
    %v1223 = vpop.f32.mrb[0].mxu0
    %1224 = vmatprep.mubr.f32.mxu0 0.0
    %v1225 = vand.u32 %v1144, 4294901760
    %v1226 = vsub.f32 %v1144, %v1225
    %v1227 = vand.u32 %v1226, 4294901760
    %v1228 = vsub.f32 %v1226, %v1227
    %v1229 = vand.u32 %v1228, 4294901760
    %1230 = vmatmul.mubr.f32.gmra.mrb[0].mxu0 %v1229
    %v1231 = vpop.f32.mrb[0].mxu0
    %v1232 = vadd.f32 %v1138, %v1231
    %v1233 = vpop.f32.mrb[0].mxu0
    %1234 = vdwg.mxu0
    %1235 = vmatprep.subr.mxu0 0.0
    %v1236 = vand.u32 %v1128, 4294901760
    %v1237 = vsub.f32 %v1128, %v1236
    %v1238 = vand.u32 %v1237, 4294901760
    %v1239 = vsub.f32 %v1237, %v1238
    %v1240 = vand.u32 %v1239, 4294901760
    %1241 = vmatpush1.msra.mxu0 %v1240
    %1242 = vmatprep.subr.mxu0 0.0
    %v1243 = vand.u32 %v1129, 4294901760
    %v1244 = vsub.f32 %v1129, %v1243
    %v1245 = vand.u32 %v1244, 4294901760
    %v1246 = vsub.f32 %v1244, %v1245
    %v1247 = vand.u32 %v1246, 4294901760
    %1248 = vmatpush1.msra.mxu0 %v1247
    %1249 = vmatprep.subr.mxu0 0.0
    %v1250 = vand.u32 %v1130, 4294901760
    %v1251 = vsub.f32 %v1130, %v1250
    %v1252 = vand.u32 %v1251, 4294901760
    %v1253 = vsub.f32 %v1251, %v1252
    %v1254 = vand.u32 %v1253, 4294901760
    %1255 = vmatpush1.msra.mxu0 %v1254
    %1256 = vmatprep.subr.mxu0 0.0
    %v1257 = vand.u32 %v1131, 4294901760
    %v1258 = vsub.f32 %v1131, %v1257
    %v1259 = vand.u32 %v1258, 4294901760
    %v1260 = vsub.f32 %v1258, %v1259
    %v1261 = vand.u32 %v1260, 4294901760
    %1262 = vmatpush1.msra.mxu0 %v1261
    %1263 = vmatprep.subr.mxu0 0.0
    %1264 = vmatpush1.msra.mxu0 0.0
    %1265 = vmatprep.subr.mxu0 0.0
    %1266 = vmatpush1.msra.mxu0 0.0
    %1267 = vmatprep.subr.mxu0 0.0
    %1268 = vmatpush1.msra.mxu0 0.0
    %1269 = vmatprep.subr.mxu0 0.0
    %1270 = vmatpush1.msra.mxu0 0.0
    %1271 = vmatprep.subr.mxu0 0.0
    %1272 = vmatpush1.msra.mxu0 0.0
    %1273 = vmatprep.subr.mxu0 0.0
    %1274 = vmatpush1.msra.mxu0 0.0
    %1275 = vmatprep.subr.mxu0 0.0
    %1276 = vmatpush1.msra.mxu0 0.0
    %1277 = vmatprep.subr.mxu0 0.0
    %1278 = vmatpush1.msra.mxu0 0.0
    %1279 = vmatprep.subr.mxu0 0.0
    %1280 = vmatpush1.msra.mxu0 0.0
    %1281 = vmatprep.subr.mxu0 0.0
    %1282 = vmatpush1.msra.mxu0 0.0
    %1283 = vmatprep.subr.mxu0 0.0
    %1284 = vmatpush1.msra.mxu0 0.0
    %1285 = vmatprep.subr.mxu0 0.0
    %1286 = vmatpush1.msra.mxu0 0.0
    %1287 = vmatprep.subr.mxu0 0.0
    %1288 = vmatpush1.msra.mxu0 0.0
    %1289 = vmatprep.subr.mxu0 0.0
    %1290 = vmatpush1.msra.mxu0 0.0
    %1291 = vmatprep.subr.mxu0 0.0
    %1292 = vmatpush1.msra.mxu0 0.0
    %1293 = vmatprep.subr.mxu0 0.0
    %1294 = vmatpush1.msra.mxu0 0.0
    %1295 = vmatprep.subr.mxu0 0.0
    %1296 = vmatpush1.msra.mxu0 0.0
    %1297 = vmatprep.subr.mxu0 0.0
    %1298 = vmatpush1.msra.mxu0 0.0
    %1299 = vmatprep.subr.mxu0 0.0
    %1300 = vmatpush1.msra.mxu0 0.0
    %1301 = vmatprep.subr.mxu0 0.0
    %1302 = vmatpush1.msra.mxu0 0.0
    %1303 = vmatprep.subr.mxu0 0.0
    %1304 = vmatpush1.msra.mxu0 0.0
    %1305 = vmatprep.subr.mxu0 0.0
    %1306 = vmatpush1.msra.mxu0 0.0
    %1307 = vmatprep.subr.mxu0 0.0
    %1308 = vmatpush1.msra.mxu0 0.0
    %1309 = vmatprep.subr.mxu0 0.0
    %1310 = vmatpush1.msra.mxu0 0.0
    %1311 = vmatprep.subr.mxu0 0.0
    %1312 = vmatpush1.msra.mxu0 0.0
    %1313 = vmatprep.subr.mxu0 0.0
    %1314 = vmatpush1.msra.mxu0 0.0
    %1315 = vmatprep.subr.mxu0 0.0
    %1316 = vmatpush1.msra.mxu0 0.0
    %1317 = vmatprep.subr.mxu0 0.0
    %1318 = vmatpush1.msra.mxu0 0.0
    %1319 = vmatprep.mubr.f32.mxu0 0.0
    %v1320 = vand.u32 %v1141, 4294901760
    %1321 = vmatmul.mubr.f32.gmra.mrb[0].mxu0 %v1320
    %v1322 = vpop.f32.mrb[0].mxu0
    %v1323 = vadd.f32 %v1222, %v1322
    %v1324 = vpop.f32.mrb[0].mxu0
    %1325 = vmatprep.mubr.f32.mxu0 0.0
    %v1326 = vand.u32 %v1144, 4294901760
    %1327 = vmatmul.mubr.f32.gmra.mrb[0].mxu0 %v1326
    %v1328 = vpop.f32.mrb[0].mxu0
    %v1329 = vadd.f32 %v1232, %v1328
    %v1330 = vpop.f32.mrb[0].mxu0
    %1331 = vdwg.mxu0
    %1332 = vmatprep.subr.mxu0 0.0
    %v1333 = vand.u32 %v1128, 4294901760
    %v1334 = vsub.f32 %v1128, %v1333
    %1335 = vmatpush1.msra.mxu0 %v1334
    %1336 = vmatprep.subr.mxu0 0.0
    %v1337 = vand.u32 %v1129, 4294901760
    %v1338 = vsub.f32 %v1129, %v1337
    %1339 = vmatpush1.msra.mxu0 %v1338
    %1340 = vmatprep.subr.mxu0 0.0
    %v1341 = vand.u32 %v1130, 4294901760
    %v1342 = vsub.f32 %v1130, %v1341
    %1343 = vmatpush1.msra.mxu0 %v1342
    %1344 = vmatprep.subr.mxu0 0.0
    %v1345 = vand.u32 %v1131, 4294901760
    %v1346 = vsub.f32 %v1131, %v1345
    %1347 = vmatpush1.msra.mxu0 %v1346
    %1348 = vmatprep.subr.mxu0 0.0
    %1349 = vmatpush1.msra.mxu0 0.0
    %1350 = vmatprep.subr.mxu0 0.0
    %1351 = vmatpush1.msra.mxu0 0.0
    %1352 = vmatprep.subr.mxu0 0.0
    %1353 = vmatpush1.msra.mxu0 0.0
    %1354 = vmatprep.subr.mxu0 0.0
    %1355 = vmatpush1.msra.mxu0 0.0
    %1356 = vmatprep.subr.mxu0 0.0
    %1357 = vmatpush1.msra.mxu0 0.0
    %1358 = vmatprep.subr.mxu0 0.0
    %1359 = vmatpush1.msra.mxu0 0.0
    %1360 = vmatprep.subr.mxu0 0.0
    %1361 = vmatpush1.msra.mxu0 0.0
    %1362 = vmatprep.subr.mxu0 0.0
    %1363 = vmatpush1.msra.mxu0 0.0
    %1364 = vmatprep.subr.mxu0 0.0
    %1365 = vmatpush1.msra.mxu0 0.0
    %1366 = vmatprep.subr.mxu0 0.0
    %1367 = vmatpush1.msra.mxu0 0.0
    %1368 = vmatprep.subr.mxu0 0.0
    %1369 = vmatpush1.msra.mxu0 0.0
    %1370 = vmatprep.subr.mxu0 0.0
    %1371 = vmatpush1.msra.mxu0 0.0
    %1372 = vmatprep.subr.mxu0 0.0
    %1373 = vmatpush1.msra.mxu0 0.0
    %1374 = vmatprep.subr.mxu0 0.0
    %1375 = vmatpush1.msra.mxu0 0.0
    %1376 = vmatprep.subr.mxu0 0.0
    %1377 = vmatpush1.msra.mxu0 0.0
    %1378 = vmatprep.subr.mxu0 0.0
    %1379 = vmatpush1.msra.mxu0 0.0
    %1380 = vmatprep.subr.mxu0 0.0
    %1381 = vmatpush1.msra.mxu0 0.0
    %1382 = vmatprep.subr.mxu0 0.0
    %1383 = vmatpush1.msra.mxu0 0.0
    %1384 = vmatprep.subr.mxu0 0.0
    %1385 = vmatpush1.msra.mxu0 0.0
    %1386 = vmatprep.subr.mxu0 0.0
    %1387 = vmatpush1.msra.mxu0 0.0
    %1388 = vmatprep.subr.mxu0 0.0
    %1389 = vmatpush1.msra.mxu0 0.0
    %1390 = vmatprep.subr.mxu0 0.0
    %1391 = vmatpush1.msra.mxu0 0.0
    %1392 = vmatprep.subr.mxu0 0.0
    %1393 = vmatpush1.msra.mxu0 0.0
    %1394 = vmatprep.subr.mxu0 0.0
    %1395 = vmatpush1.msra.mxu0 0.0
    %1396 = vmatprep.subr.mxu0 0.0
    %1397 = vmatpush1.msra.mxu0 0.0
    %1398 = vmatprep.subr.mxu0 0.0
    %1399 = vmatpush1.msra.mxu0 0.0
    %1400 = vmatprep.subr.mxu0 0.0
    %1401 = vmatpush1.msra.mxu0 0.0
    %1402 = vmatprep.subr.mxu0 0.0
    %1403 = vmatpush1.msra.mxu0 0.0
    %1404 = vmatprep.mubr.f32.mxu0 0.0
    %v1405 = vand.u32 %v1141, 4294901760
    %v1406 = vsub.f32 %v1141, %v1405
    %1407 = vmatmul.mubr.f32.gmra.mrb[0].mxu0 %v1406
    %v1408 = vpop.f32.mrb[0].mxu0
    %v1409 = vadd.f32 %v1323, %v1408
    %v1410 = vpop.f32.mrb[0].mxu0
    %1411 = vmatprep.mubr.f32.mxu0 0.0
    %v1412 = vand.u32 %v1144, 4294901760
    %v1413 = vsub.f32 %v1144, %v1412
    %1414 = vmatmul.mubr.f32.gmra.mrb[0].mxu0 %v1413
    %v1415 = vpop.f32.mrb[0].mxu0
    %v1416 = vadd.f32 %v1329, %v1415
    %v1417 = vpop.f32.mrb[0].mxu0
    %1418 = vdwg.mxu0
    %1419 = vmatprep.subr.mxu0 0.0
    %v1420 = vand.u32 %v1128, 4294901760
    %1421 = vmatpush1.msra.mxu0 %v1420
    %1422 = vmatprep.subr.mxu0 0.0
    %v1423 = vand.u32 %v1129, 4294901760
    %1424 = vmatpush1.msra.mxu0 %v1423
    %1425 = vmatprep.subr.mxu0 0.0
    %v1426 = vand.u32 %v1130, 4294901760
    %1427 = vmatpush1.msra.mxu0 %v1426
    %1428 = vmatprep.subr.mxu0 0.0
    %v1429 = vand.u32 %v1131, 4294901760
    %1430 = vmatpush1.msra.mxu0 %v1429
    %1431 = vmatprep.subr.mxu0 0.0
    %1432 = vmatpush1.msra.mxu0 0.0
    %1433 = vmatprep.subr.mxu0 0.0
    %1434 = vmatpush1.msra.mxu0 0.0
    %1435 = vmatprep.subr.mxu0 0.0
    %1436 = vmatpush1.msra.mxu0 0.0
    %1437 = vmatprep.subr.mxu0 0.0
    %1438 = vmatpush1.msra.mxu0 0.0
    %1439 = vmatprep.subr.mxu0 0.0
    %1440 = vmatpush1.msra.mxu0 0.0
    %1441 = vmatprep.subr.mxu0 0.0
    %1442 = vmatpush1.msra.mxu0 0.0
    %1443 = vmatprep.subr.mxu0 0.0
    %1444 = vmatpush1.msra.mxu0 0.0
    %1445 = vmatprep.subr.mxu0 0.0
    %1446 = vmatpush1.msra.mxu0 0.0
    %1447 = vmatprep.subr.mxu0 0.0
    %1448 = vmatpush1.msra.mxu0 0.0
    %1449 = vmatprep.subr.mxu0 0.0
    %1450 = vmatpush1.msra.mxu0 0.0
    %1451 = vmatprep.subr.mxu0 0.0
    %1452 = vmatpush1.msra.mxu0 0.0
    %1453 = vmatprep.subr.mxu0 0.0
    %1454 = vmatpush1.msra.mxu0 0.0
    %1455 = vmatprep.subr.mxu0 0.0
    %1456 = vmatpush1.msra.mxu0 0.0
    %1457 = vmatprep.subr.mxu0 0.0
    %1458 = vmatpush1.msra.mxu0 0.0
    %1459 = vmatprep.subr.mxu0 0.0
    %1460 = vmatpush1.msra.mxu0 0.0
    %1461 = vmatprep.subr.mxu0 0.0
    %1462 = vmatpush1.msra.mxu0 0.0
    %1463 = vmatprep.subr.mxu0 0.0
    %1464 = vmatpush1.msra.mxu0 0.0
    %1465 = vmatprep.subr.mxu0 0.0
    %1466 = vmatpush1.msra.mxu0 0.0
    %1467 = vmatprep.subr.mxu0 0.0
    %1468 = vmatpush1.msra.mxu0 0.0
    %1469 = vmatprep.subr.mxu0 0.0
    %1470 = vmatpush1.msra.mxu0 0.0
    %1471 = vmatprep.subr.mxu0 0.0
    %1472 = vmatpush1.msra.mxu0 0.0
    %1473 = vmatprep.subr.mxu0 0.0
    %1474 = vmatpush1.msra.mxu0 0.0
    %1475 = vmatprep.subr.mxu0 0.0
    %1476 = vmatpush1.msra.mxu0 0.0
    %1477 = vmatprep.subr.mxu0 0.0
    %1478 = vmatpush1.msra.mxu0 0.0
    %1479 = vmatprep.subr.mxu0 0.0
    %1480 = vmatpush1.msra.mxu0 0.0
    %1481 = vmatprep.subr.mxu0 0.0
    %1482 = vmatpush1.msra.mxu0 0.0
    %1483 = vmatprep.subr.mxu0 0.0
    %1484 = vmatpush1.msra.mxu0 0.0
    %1485 = vmatprep.subr.mxu0 0.0
    %1486 = vmatpush1.msra.mxu0 0.0
    %1487 = vmatprep.mubr.f32.mxu0 0.0
    %v1488 = vand.u32 %v1141, 4294901760
    %v1489 = vsub.f32 %v1141, %v1488
    %v1490 = vand.u32 %v1489, 4294901760
    %1491 = vmatmul.mubr.f32.gmra.mrb[0].mxu0 %v1490
    %v1492 = vpop.f32.mrb[0].mxu0
    %v1493 = vadd.f32 %v1409, %v1492
    %v1494 = vpop.f32.mrb[0].mxu0
    %1495 = vmatprep.mubr.f32.mxu0 0.0
    %v1496 = vand.u32 %v1144, 4294901760
    %v1497 = vsub.f32 %v1144, %v1496
    %v1498 = vand.u32 %v1497, 4294901760
    %1499 = vmatmul.mubr.f32.gmra.mrb[0].mxu0 %v1498
    %v1500 = vpop.f32.mrb[0].mxu0
    %v1501 = vadd.f32 %v1416, %v1500
    %v1502 = vpop.f32.mrb[0].mxu0
    %1503 = vdwg.mxu0
    %1504 = vmatprep.subr.mxu0 0.0
    %v1505 = vand.u32 %v1128, 4294901760
    %v1506 = vsub.f32 %v1128, %v1505
    %v1507 = vand.u32 %v1506, 4294901760
    %1508 = vmatpush1.msra.mxu0 %v1507
    %1509 = vmatprep.subr.mxu0 0.0
    %v1510 = vand.u32 %v1129, 4294901760
    %v1511 = vsub.f32 %v1129, %v1510
    %v1512 = vand.u32 %v1511, 4294901760
    %1513 = vmatpush1.msra.mxu0 %v1512
    %1514 = vmatprep.subr.mxu0 0.0
    %v1515 = vand.u32 %v1130, 4294901760
    %v1516 = vsub.f32 %v1130, %v1515
    %v1517 = vand.u32 %v1516, 4294901760
    %1518 = vmatpush1.msra.mxu0 %v1517
    %1519 = vmatprep.subr.mxu0 0.0
    %v1520 = vand.u32 %v1131, 4294901760
    %v1521 = vsub.f32 %v1131, %v1520
    %v1522 = vand.u32 %v1521, 4294901760
    %1523 = vmatpush1.msra.mxu0 %v1522
    %1524 = vmatprep.subr.mxu0 0.0
    %1525 = vmatpush1.msra.mxu0 0.0
    %1526 = vmatprep.subr.mxu0 0.0
    %1527 = vmatpush1.msra.mxu0 0.0
    %1528 = vmatprep.subr.mxu0 0.0
    %1529 = vmatpush1.msra.mxu0 0.0
    %1530 = vmatprep.subr.mxu0 0.0
    %1531 = vmatpush1.msra.mxu0 0.0
    %1532 = vmatprep.subr.mxu0 0.0
    %1533 = vmatpush1.msra.mxu0 0.0
    %1534 = vmatprep.subr.mxu0 0.0
    %1535 = vmatpush1.msra.mxu0 0.0
    %1536 = vmatprep.subr.mxu0 0.0
    %1537 = vmatpush1.msra.mxu0 0.0
    %1538 = vmatprep.subr.mxu0 0.0
    %1539 = vmatpush1.msra.mxu0 0.0
    %1540 = vmatprep.subr.mxu0 0.0
    %1541 = vmatpush1.msra.mxu0 0.0
    %1542 = vmatprep.subr.mxu0 0.0
    %1543 = vmatpush1.msra.mxu0 0.0
    %1544 = vmatprep.subr.mxu0 0.0
    %1545 = vmatpush1.msra.mxu0 0.0
    %1546 = vmatprep.subr.mxu0 0.0
    %1547 = vmatpush1.msra.mxu0 0.0
    %1548 = vmatprep.subr.mxu0 0.0
    %1549 = vmatpush1.msra.mxu0 0.0
    %1550 = vmatprep.subr.mxu0 0.0
    %1551 = vmatpush1.msra.mxu0 0.0
    %1552 = vmatprep.subr.mxu0 0.0
    %1553 = vmatpush1.msra.mxu0 0.0
    %1554 = vmatprep.subr.mxu0 0.0
    %1555 = vmatpush1.msra.mxu0 0.0
    %1556 = vmatprep.subr.mxu0 0.0
    %1557 = vmatpush1.msra.mxu0 0.0
    %1558 = vmatprep.subr.mxu0 0.0
    %1559 = vmatpush1.msra.mxu0 0.0
    %1560 = vmatprep.subr.mxu0 0.0
    %1561 = vmatpush1.msra.mxu0 0.0
    %1562 = vmatprep.subr.mxu0 0.0
    %1563 = vmatpush1.msra.mxu0 0.0
    %1564 = vmatprep.subr.mxu0 0.0
    %1565 = vmatpush1.msra.mxu0 0.0
    %1566 = vmatprep.subr.mxu0 0.0
    %1567 = vmatpush1.msra.mxu0 0.0
    %1568 = vmatprep.subr.mxu0 0.0
    %1569 = vmatpush1.msra.mxu0 0.0
    %1570 = vmatprep.subr.mxu0 0.0
    %1571 = vmatpush1.msra.mxu0 0.0
    %1572 = vmatprep.subr.mxu0 0.0
    %1573 = vmatpush1.msra.mxu0 0.0
    %1574 = vmatprep.subr.mxu0 0.0
    %1575 = vmatpush1.msra.mxu0 0.0
    %1576 = vmatprep.subr.mxu0 0.0
    %1577 = vmatpush1.msra.mxu0 0.0
    %1578 = vmatprep.subr.mxu0 0.0
    %1579 = vmatpush1.msra.mxu0 0.0
    %1580 = vmatprep.mubr.f32.mxu0 0.0
    %v1581 = vand.u32 %v1141, 4294901760
    %1582 = vmatmul.mubr.f32.gmra.mrb[0].mxu0 %v1581
    %v1583 = vpop.f32.mrb[0].mxu0
    %v1584 = vadd.f32 %v1493, %v1583
    %v1585 = vpop.f32.mrb[0].mxu0
    %1586 = vmatprep.mubr.f32.mxu0 0.0
    %v1587 = vand.u32 %v1144, 4294901760
    %1588 = vmatmul.mubr.f32.gmra.mrb[0].mxu0 %v1587
    %v1589 = vpop.f32.mrb[0].mxu0
    %v1590 = vadd.f32 %v1501, %v1589
    %v1591 = vpop.f32.mrb[0].mxu0
    %1592 = vdwg.mxu0
    %1593 = vmatprep.subr.mxu0 0.0
    %v1594 = vand.u32 %v1128, 4294901760
    %1595 = vmatpush1.msra.mxu0 %v1594
    %1596 = vmatprep.subr.mxu0 0.0
    %v1597 = vand.u32 %v1129, 4294901760
    %1598 = vmatpush1.msra.mxu0 %v1597
    %1599 = vmatprep.subr.mxu0 0.0
    %v1600 = vand.u32 %v1130, 4294901760
    %1601 = vmatpush1.msra.mxu0 %v1600
    %1602 = vmatprep.subr.mxu0 0.0
    %v1603 = vand.u32 %v1131, 4294901760
    %1604 = vmatpush1.msra.mxu0 %v1603
    %1605 = vmatprep.subr.mxu0 0.0
    %1606 = vmatpush1.msra.mxu0 0.0
    %1607 = vmatprep.subr.mxu0 0.0
    %1608 = vmatpush1.msra.mxu0 0.0
    %1609 = vmatprep.subr.mxu0 0.0
    %1610 = vmatpush1.msra.mxu0 0.0
    %1611 = vmatprep.subr.mxu0 0.0
    %1612 = vmatpush1.msra.mxu0 0.0
    %1613 = vmatprep.subr.mxu0 0.0
    %1614 = vmatpush1.msra.mxu0 0.0
    %1615 = vmatprep.subr.mxu0 0.0
    %1616 = vmatpush1.msra.mxu0 0.0
    %1617 = vmatprep.subr.mxu0 0.0
    %1618 = vmatpush1.msra.mxu0 0.0
    %1619 = vmatprep.subr.mxu0 0.0
    %1620 = vmatpush1.msra.mxu0 0.0
    %1621 = vmatprep.subr.mxu0 0.0
    %1622 = vmatpush1.msra.mxu0 0.0
    %1623 = vmatprep.subr.mxu0 0.0
    %1624 = vmatpush1.msra.mxu0 0.0
    %1625 = vmatprep.subr.mxu0 0.0
    %1626 = vmatpush1.msra.mxu0 0.0
    %1627 = vmatprep.subr.mxu0 0.0
    %1628 = vmatpush1.msra.mxu0 0.0
    %1629 = vmatprep.subr.mxu0 0.0
    %1630 = vmatpush1.msra.mxu0 0.0
    %1631 = vmatprep.subr.mxu0 0.0
    %1632 = vmatpush1.msra.mxu0 0.0
    %1633 = vmatprep.subr.mxu0 0.0
    %1634 = vmatpush1.msra.mxu0 0.0
    %1635 = vmatprep.subr.mxu0 0.0
    %1636 = vmatpush1.msra.mxu0 0.0
    %1637 = vmatprep.subr.mxu0 0.0
    %1638 = vmatpush1.msra.mxu0 0.0
    %1639 = vmatprep.subr.mxu0 0.0
    %1640 = vmatpush1.msra.mxu0 0.0
    %1641 = vmatprep.subr.mxu0 0.0
    %1642 = vmatpush1.msra.mxu0 0.0
    %1643 = vmatprep.subr.mxu0 0.0
    %1644 = vmatpush1.msra.mxu0 0.0
    %1645 = vmatprep.subr.mxu0 0.0
    %1646 = vmatpush1.msra.mxu0 0.0
    %1647 = vmatprep.subr.mxu0 0.0
    %1648 = vmatpush1.msra.mxu0 0.0
    %1649 = vmatprep.subr.mxu0 0.0
    %1650 = vmatpush1.msra.mxu0 0.0
    %1651 = vmatprep.subr.mxu0 0.0
    %1652 = vmatpush1.msra.mxu0 0.0
    %1653 = vmatprep.subr.mxu0 0.0
    %1654 = vmatpush1.msra.mxu0 0.0
    %1655 = vmatprep.subr.mxu0 0.0
    %1656 = vmatpush1.msra.mxu0 0.0
    %1657 = vmatprep.subr.mxu0 0.0
    %1658 = vmatpush1.msra.mxu0 0.0
    %1659 = vmatprep.subr.mxu0 0.0
    %1660 = vmatpush1.msra.mxu0 0.0
    %1661 = vmatprep.mubr.f32.mxu0 0.0
    %v1662 = vand.u32 %v1141, 4294901760
    %1663 = vmatmul.mubr.f32.gmra.mrb[0].mxu0 %v1662
    %v1664 = vpop.f32.mrb[0].mxu0
    %v1665 = vadd.f32 %v1584, %v1664
    %v1666 = vpop.f32.mrb[0].mxu0
    %1667 = vmatprep.mubr.f32.mxu0 0.0
    %v1668 = vand.u32 %v1144, 4294901760
    %1669 = vmatmul.mubr.f32.gmra.mrb[0].mxu0 %v1668
    %v1670 = vpop.f32.mrb[0].mxu0
    %v1671 = vadd.f32 %v1590, %v1670
    %v1672 = vpop.f32.mrb[0].mxu0
    %1673 = vdwg.mxu0
    %v1674 = vtanh.pop %v1665
    %v1675 = vtanh.pop %v1671
    %v1676 = vld [vmem:[%s5] sm:$0xff]
    %v1677 = vld [vmem:[%s5 + $0x8] sm:$0xff]
    %v1678 = vld [vmem:[%s5 + $0x10] sm:$0xff]
    %v1679 = vld [vmem:[%s5 + $0x18] sm:$0xff]
    %v1680 = vld [vmem:[%s6] sm:$0x1]
    %v1682 = vlaneseq
    %v1683 = vshrl.u32 %v1682, 7
    %v1684 = vsub.s32 0, %v1683
    %v1685 = vrot.slane %v1680, %v1684
    %v1688 = vsel %vm590, %v1674, 0
    %v1691 = vsel %vm590, %v1675, 0
    %1693 = vmatprep.subr.mxu0 0.0
    %v1694 = vand.u32 %v1676, 4294901760
    %1695 = vmatpush1.msra.mxu0 %v1694
    %1696 = vmatprep.subr.mxu0 0.0
    %v1697 = vand.u32 %v1677, 4294901760
    %1698 = vmatpush1.msra.mxu0 %v1697
    %1699 = vmatprep.subr.mxu0 0.0
    %v1700 = vand.u32 %v1678, 4294901760
    %1701 = vmatpush1.msra.mxu0 %v1700
    %1702 = vmatprep.subr.mxu0 0.0
    %v1703 = vand.u32 %v1679, 4294901760
    %1704 = vmatpush1.msra.mxu0 %v1703
    %1705 = vmatprep.subr.mxu0 0.0
    %1706 = vmatpush1.msra.mxu0 0.0
    %1707 = vmatprep.subr.mxu0 0.0
    %1708 = vmatpush1.msra.mxu0 0.0
    %1709 = vmatprep.subr.mxu0 0.0
    %1710 = vmatpush1.msra.mxu0 0.0
    %1711 = vmatprep.subr.mxu0 0.0
    %1712 = vmatpush1.msra.mxu0 0.0
    %1713 = vmatprep.subr.mxu0 0.0
    %1714 = vmatpush1.msra.mxu0 0.0
    %1715 = vmatprep.subr.mxu0 0.0
    %1716 = vmatpush1.msra.mxu0 0.0
    %1717 = vmatprep.subr.mxu0 0.0
    %1718 = vmatpush1.msra.mxu0 0.0
    %1719 = vmatprep.subr.mxu0 0.0
    %1720 = vmatpush1.msra.mxu0 0.0
    %1721 = vmatprep.subr.mxu0 0.0
    %1722 = vmatpush1.msra.mxu0 0.0
    %1723 = vmatprep.subr.mxu0 0.0
    %1724 = vmatpush1.msra.mxu0 0.0
    %1725 = vmatprep.subr.mxu0 0.0
    %1726 = vmatpush1.msra.mxu0 0.0
    %1727 = vmatprep.subr.mxu0 0.0
    %1728 = vmatpush1.msra.mxu0 0.0
    %1729 = vmatprep.subr.mxu0 0.0
    %1730 = vmatpush1.msra.mxu0 0.0
    %1731 = vmatprep.subr.mxu0 0.0
    %1732 = vmatpush1.msra.mxu0 0.0
    %1733 = vmatprep.subr.mxu0 0.0
    %1734 = vmatpush1.msra.mxu0 0.0
    %1735 = vmatprep.subr.mxu0 0.0
    %1736 = vmatpush1.msra.mxu0 0.0
    %1737 = vmatprep.subr.mxu0 0.0
    %1738 = vmatpush1.msra.mxu0 0.0
    %1739 = vmatprep.subr.mxu0 0.0
    %1740 = vmatpush1.msra.mxu0 0.0
    %1741 = vmatprep.subr.mxu0 0.0
    %1742 = vmatpush1.msra.mxu0 0.0
    %1743 = vmatprep.subr.mxu0 0.0
    %1744 = vmatpush1.msra.mxu0 0.0
    %1745 = vmatprep.subr.mxu0 0.0
    %1746 = vmatpush1.msra.mxu0 0.0
    %1747 = vmatprep.subr.mxu0 0.0
    %1748 = vmatpush1.msra.mxu0 0.0
    %1749 = vmatprep.subr.mxu0 0.0
    %1750 = vmatpush1.msra.mxu0 0.0
    %1751 = vmatprep.subr.mxu0 0.0
    %1752 = vmatpush1.msra.mxu0 0.0
    %1753 = vmatprep.subr.mxu0 0.0
    %1754 = vmatpush1.msra.mxu0 0.0
    %1755 = vmatprep.subr.mxu0 0.0
    %1756 = vmatpush1.msra.mxu0 0.0
    %1757 = vmatprep.subr.mxu0 0.0
    %1758 = vmatpush1.msra.mxu0 0.0
    %1759 = vmatprep.subr.mxu0 0.0
    %1760 = vmatpush1.msra.mxu0 0.0
    %1761 = vmatprep.mubr.f32.mxu0 0.0
    %v1762 = vand.u32 %v1688, 4294901760
    %v1763 = vsub.f32 %v1688, %v1762
    %v1764 = vand.u32 %v1763, 4294901760
    %v1765 = vsub.f32 %v1763, %v1764
    %v1766 = vand.u32 %v1765, 4294901760
    %1767 = vmatmul.mubr.f32.gmra.mrb[0].mxu0 %v1766
    %v1768 = vpop.f32.mrb[0].mxu0
    %v1769 = vadd.f32 %v1685, %v1768
    %v1770 = vpop.f32.mrb[0].mxu0
    %1771 = vmatprep.mubr.f32.mxu0 0.0
    %v1772 = vand.u32 %v1691, 4294901760
    %v1773 = vsub.f32 %v1691, %v1772
    %v1774 = vand.u32 %v1773, 4294901760
    %v1775 = vsub.f32 %v1773, %v1774
    %v1776 = vand.u32 %v1775, 4294901760
    %1777 = vmatmul.mubr.f32.gmra.mrb[0].mxu0 %v1776
    %v1778 = vpop.f32.mrb[0].mxu0
    %v1779 = vadd.f32 %v1685, %v1778
    %v1780 = vpop.f32.mrb[0].mxu0
    %1781 = vdwg.mxu0
    %1782 = vmatprep.subr.mxu0 0.0
    %v1783 = vand.u32 %v1676, 4294901760
    %v1784 = vsub.f32 %v1676, %v1783
    %v1785 = vand.u32 %v1784, 4294901760
    %v1786 = vsub.f32 %v1784, %v1785
    %v1787 = vand.u32 %v1786, 4294901760
    %1788 = vmatpush1.msra.mxu0 %v1787
    %1789 = vmatprep.subr.mxu0 0.0
    %v1790 = vand.u32 %v1677, 4294901760
    %v1791 = vsub.f32 %v1677, %v1790
    %v1792 = vand.u32 %v1791, 4294901760
    %v1793 = vsub.f32 %v1791, %v1792
    %v1794 = vand.u32 %v1793, 4294901760
    %1795 = vmatpush1.msra.mxu0 %v1794
    %1796 = vmatprep.subr.mxu0 0.0
    %v1797 = vand.u32 %v1678, 4294901760
    %v1798 = vsub.f32 %v1678, %v1797
    %v1799 = vand.u32 %v1798, 4294901760
    %v1800 = vsub.f32 %v1798, %v1799
    %v1801 = vand.u32 %v1800, 4294901760
    %1802 = vmatpush1.msra.mxu0 %v1801
    %1803 = vmatprep.subr.mxu0 0.0
    %v1804 = vand.u32 %v1679, 4294901760
    %v1805 = vsub.f32 %v1679, %v1804
    %v1806 = vand.u32 %v1805, 4294901760
    %v1807 = vsub.f32 %v1805, %v1806
    %v1808 = vand.u32 %v1807, 4294901760
    %1809 = vmatpush1.msra.mxu0 %v1808
    %1810 = vmatprep.subr.mxu0 0.0
    %1811 = vmatpush1.msra.mxu0 0.0
    %1812 = vmatprep.subr.mxu0 0.0
    %1813 = vmatpush1.msra.mxu0 0.0
    %1814 = vmatprep.subr.mxu0 0.0
    %1815 = vmatpush1.msra.mxu0 0.0
    %1816 = vmatprep.subr.mxu0 0.0
    %1817 = vmatpush1.msra.mxu0 0.0
    %1818 = vmatprep.subr.mxu0 0.0
    %1819 = vmatpush1.msra.mxu0 0.0
    %1820 = vmatprep.subr.mxu0 0.0
    %1821 = vmatpush1.msra.mxu0 0.0
    %1822 = vmatprep.subr.mxu0 0.0
    %1823 = vmatpush1.msra.mxu0 0.0
    %1824 = vmatprep.subr.mxu0 0.0
    %1825 = vmatpush1.msra.mxu0 0.0
    %1826 = vmatprep.subr.mxu0 0.0
    %1827 = vmatpush1.msra.mxu0 0.0
    %1828 = vmatprep.subr.mxu0 0.0
    %1829 = vmatpush1.msra.mxu0 0.0
    %1830 = vmatprep.subr.mxu0 0.0
    %1831 = vmatpush1.msra.mxu0 0.0
    %1832 = vmatprep.subr.mxu0 0.0
    %1833 = vmatpush1.msra.mxu0 0.0
    %1834 = vmatprep.subr.mxu0 0.0
    %1835 = vmatpush1.msra.mxu0 0.0
    %1836 = vmatprep.subr.mxu0 0.0
    %1837 = vmatpush1.msra.mxu0 0.0
    %1838 = vmatprep.subr.mxu0 0.0
    %1839 = vmatpush1.msra.mxu0 0.0
    %1840 = vmatprep.subr.mxu0 0.0
    %1841 = vmatpush1.msra.mxu0 0.0
    %1842 = vmatprep.subr.mxu0 0.0
    %1843 = vmatpush1.msra.mxu0 0.0
    %1844 = vmatprep.subr.mxu0 0.0
    %1845 = vmatpush1.msra.mxu0 0.0
    %1846 = vmatprep.subr.mxu0 0.0
    %1847 = vmatpush1.msra.mxu0 0.0
    %1848 = vmatprep.subr.mxu0 0.0
    %1849 = vmatpush1.msra.mxu0 0.0
    %1850 = vmatprep.subr.mxu0 0.0
    %1851 = vmatpush1.msra.mxu0 0.0
    %1852 = vmatprep.subr.mxu0 0.0
    %1853 = vmatpush1.msra.mxu0 0.0
    %1854 = vmatprep.subr.mxu0 0.0
    %1855 = vmatpush1.msra.mxu0 0.0
    %1856 = vmatprep.subr.mxu0 0.0
    %1857 = vmatpush1.msra.mxu0 0.0
    %1858 = vmatprep.subr.mxu0 0.0
    %1859 = vmatpush1.msra.mxu0 0.0
    %1860 = vmatprep.subr.mxu0 0.0
    %1861 = vmatpush1.msra.mxu0 0.0
    %1862 = vmatprep.subr.mxu0 0.0
    %1863 = vmatpush1.msra.mxu0 0.0
    %1864 = vmatprep.subr.mxu0 0.0
    %1865 = vmatpush1.msra.mxu0 0.0
    %1866 = vmatprep.mubr.f32.mxu0 0.0
    %v1867 = vand.u32 %v1688, 4294901760
    %1868 = vmatmul.mubr.f32.gmra.mrb[0].mxu0 %v1867
    %v1869 = vpop.f32.mrb[0].mxu0
    %v1870 = vadd.f32 %v1769, %v1869
    %v1871 = vpop.f32.mrb[0].mxu0
    %1872 = vmatprep.mubr.f32.mxu0 0.0
    %v1873 = vand.u32 %v1691, 4294901760
    %1874 = vmatmul.mubr.f32.gmra.mrb[0].mxu0 %v1873
    %v1875 = vpop.f32.mrb[0].mxu0
    %v1876 = vadd.f32 %v1779, %v1875
    %v1877 = vpop.f32.mrb[0].mxu0
    %1878 = vdwg.mxu0
    %1879 = vmatprep.subr.mxu0 0.0
    %v1880 = vand.u32 %v1676, 4294901760
    %v1881 = vsub.f32 %v1676, %v1880
    %1882 = vmatpush1.msra.mxu0 %v1881
    %1883 = vmatprep.subr.mxu0 0.0
    %v1884 = vand.u32 %v1677, 4294901760
    %v1885 = vsub.f32 %v1677, %v1884
    %1886 = vmatpush1.msra.mxu0 %v1885
    %1887 = vmatprep.subr.mxu0 0.0
    %v1888 = vand.u32 %v1678, 4294901760
    %v1889 = vsub.f32 %v1678, %v1888
    %1890 = vmatpush1.msra.mxu0 %v1889
    %1891 = vmatprep.subr.mxu0 0.0
    %v1892 = vand.u32 %v1679, 4294901760
    %v1893 = vsub.f32 %v1679, %v1892
    %1894 = vmatpush1.msra.mxu0 %v1893
    %1895 = vmatprep.subr.mxu0 0.0
    %1896 = vmatpush1.msra.mxu0 0.0
    %1897 = vmatprep.subr.mxu0 0.0
    %1898 = vmatpush1.msra.mxu0 0.0
    %1899 = vmatprep.subr.mxu0 0.0
    %1900 = vmatpush1.msra.mxu0 0.0
    %1901 = vmatprep.subr.mxu0 0.0
    %1902 = vmatpush1.msra.mxu0 0.0
    %1903 = vmatprep.subr.mxu0 0.0
    %1904 = vmatpush1.msra.mxu0 0.0
    %1905 = vmatprep.subr.mxu0 0.0
    %1906 = vmatpush1.msra.mxu0 0.0
    %1907 = vmatprep.subr.mxu0 0.0
    %1908 = vmatpush1.msra.mxu0 0.0
    %1909 = vmatprep.subr.mxu0 0.0
    %1910 = vmatpush1.msra.mxu0 0.0
    %1911 = vmatprep.subr.mxu0 0.0
    %1912 = vmatpush1.msra.mxu0 0.0
    %1913 = vmatprep.subr.mxu0 0.0
    %1914 = vmatpush1.msra.mxu0 0.0
    %1915 = vmatprep.subr.mxu0 0.0
    %1916 = vmatpush1.msra.mxu0 0.0
    %1917 = vmatprep.subr.mxu0 0.0
    %1918 = vmatpush1.msra.mxu0 0.0
    %1919 = vmatprep.subr.mxu0 0.0
    %1920 = vmatpush1.msra.mxu0 0.0
    %1921 = vmatprep.subr.mxu0 0.0
    %1922 = vmatpush1.msra.mxu0 0.0
    %1923 = vmatprep.subr.mxu0 0.0
    %1924 = vmatpush1.msra.mxu0 0.0
    %1925 = vmatprep.subr.mxu0 0.0
    %1926 = vmatpush1.msra.mxu0 0.0
    %1927 = vmatprep.subr.mxu0 0.0
    %1928 = vmatpush1.msra.mxu0 0.0
    %1929 = vmatprep.subr.mxu0 0.0
    %1930 = vmatpush1.msra.mxu0 0.0
    %1931 = vmatprep.subr.mxu0 0.0
    %1932 = vmatpush1.msra.mxu0 0.0
    %1933 = vmatprep.subr.mxu0 0.0
    %1934 = vmatpush1.msra.mxu0 0.0
    %1935 = vmatprep.subr.mxu0 0.0
    %1936 = vmatpush1.msra.mxu0 0.0
    %1937 = vmatprep.subr.mxu0 0.0
    %1938 = vmatpush1.msra.mxu0 0.0
    %1939 = vmatprep.subr.mxu0 0.0
    %1940 = vmatpush1.msra.mxu0 0.0
    %1941 = vmatprep.subr.mxu0 0.0
    %1942 = vmatpush1.msra.mxu0 0.0
    %1943 = vmatprep.subr.mxu0 0.0
    %1944 = vmatpush1.msra.mxu0 0.0
    %1945 = vmatprep.subr.mxu0 0.0
    %1946 = vmatpush1.msra.mxu0 0.0
    %1947 = vmatprep.subr.mxu0 0.0
    %1948 = vmatpush1.msra.mxu0 0.0
    %1949 = vmatprep.subr.mxu0 0.0
    %1950 = vmatpush1.msra.mxu0 0.0
    %1951 = vmatprep.mubr.f32.mxu0 0.0
    %v1952 = vand.u32 %v1688, 4294901760
    %v1953 = vsub.f32 %v1688, %v1952
    %1954 = vmatmul.mubr.f32.gmra.mrb[0].mxu0 %v1953
    %v1955 = vpop.f32.mrb[0].mxu0
    %v1956 = vadd.f32 %v1870, %v1955
    %v1957 = vpop.f32.mrb[0].mxu0
    %1958 = vmatprep.mubr.f32.mxu0 0.0
    %v1959 = vand.u32 %v1691, 4294901760
    %v1960 = vsub.f32 %v1691, %v1959
    %1961 = vmatmul.mubr.f32.gmra.mrb[0].mxu0 %v1960
    %v1962 = vpop.f32.mrb[0].mxu0
    %v1963 = vadd.f32 %v1876, %v1962
    %v1964 = vpop.f32.mrb[0].mxu0
    %1965 = vdwg.mxu0
    %1966 = vmatprep.subr.mxu0 0.0
    %v1967 = vand.u32 %v1676, 4294901760
    %1968 = vmatpush1.msra.mxu0 %v1967
    %1969 = vmatprep.subr.mxu0 0.0
    %v1970 = vand.u32 %v1677, 4294901760
    %1971 = vmatpush1.msra.mxu0 %v1970
    %1972 = vmatprep.subr.mxu0 0.0
    %v1973 = vand.u32 %v1678, 4294901760
    %1974 = vmatpush1.msra.mxu0 %v1973
    %1975 = vmatprep.subr.mxu0 0.0
    %v1976 = vand.u32 %v1679, 4294901760
    %1977 = vmatpush1.msra.mxu0 %v1976
    %1978 = vmatprep.subr.mxu0 0.0
    %1979 = vmatpush1.msra.mxu0 0.0
    %1980 = vmatprep.subr.mxu0 0.0
    %1981 = vmatpush1.msra.mxu0 0.0
    %1982 = vmatprep.subr.mxu0 0.0
    %1983 = vmatpush1.msra.mxu0 0.0
    %1984 = vmatprep.subr.mxu0 0.0
    %1985 = vmatpush1.msra.mxu0 0.0
    %1986 = vmatprep.subr.mxu0 0.0
    %1987 = vmatpush1.msra.mxu0 0.0
    %1988 = vmatprep.subr.mxu0 0.0
    %1989 = vmatpush1.msra.mxu0 0.0
    %1990 = vmatprep.subr.mxu0 0.0
    %1991 = vmatpush1.msra.mxu0 0.0
    %1992 = vmatprep.subr.mxu0 0.0
    %1993 = vmatpush1.msra.mxu0 0.0
    %1994 = vmatprep.subr.mxu0 0.0
    %1995 = vmatpush1.msra.mxu0 0.0
    %1996 = vmatprep.subr.mxu0 0.0
    %1997 = vmatpush1.msra.mxu0 0.0
    %1998 = vmatprep.subr.mxu0 0.0
    %1999 = vmatpush1.msra.mxu0 0.0
    %2000 = vmatprep.subr.mxu0 0.0
    %2001 = vmatpush1.msra.mxu0 0.0
    %2002 = vmatprep.subr.mxu0 0.0
    %2003 = vmatpush1.msra.mxu0 0.0
    %2004 = vmatprep.subr.mxu0 0.0
    %2005 = vmatpush1.msra.mxu0 0.0
    %2006 = vmatprep.subr.mxu0 0.0
    %2007 = vmatpush1.msra.mxu0 0.0
    %2008 = vmatprep.subr.mxu0 0.0
    %2009 = vmatpush1.msra.mxu0 0.0
    %2010 = vmatprep.subr.mxu0 0.0
    %2011 = vmatpush1.msra.mxu0 0.0
    %2012 = vmatprep.subr.mxu0 0.0
    %2013 = vmatpush1.msra.mxu0 0.0
    %2014 = vmatprep.subr.mxu0 0.0
    %2015 = vmatpush1.msra.mxu0 0.0
    %2016 = vmatprep.subr.mxu0 0.0
    %2017 = vmatpush1.msra.mxu0 0.0
    %2018 = vmatprep.subr.mxu0 0.0
    %2019 = vmatpush1.msra.mxu0 0.0
    %2020 = vmatprep.subr.mxu0 0.0
    %2021 = vmatpush1.msra.mxu0 0.0
    %2022 = vmatprep.subr.mxu0 0.0
    %2023 = vmatpush1.msra.mxu0 0.0
    %2024 = vmatprep.subr.mxu0 0.0
    %2025 = vmatpush1.msra.mxu0 0.0
    %2026 = vmatprep.subr.mxu0 0.0
    %2027 = vmatpush1.msra.mxu0 0.0
    %2028 = vmatprep.subr.mxu0 0.0
    %2029 = vmatpush1.msra.mxu0 0.0
    %2030 = vmatprep.subr.mxu0 0.0
    %2031 = vmatpush1.msra.mxu0 0.0
    %2032 = vmatprep.subr.mxu0 0.0
    %2033 = vmatpush1.msra.mxu0 0.0
    %2034 = vmatprep.mubr.f32.mxu0 0.0
    %v2035 = vand.u32 %v1688, 4294901760
    %v2036 = vsub.f32 %v1688, %v2035
    %v2037 = vand.u32 %v2036, 4294901760
    %2038 = vmatmul.mubr.f32.gmra.mrb[0].mxu0 %v2037
    %v2039 = vpop.f32.mrb[0].mxu0
    %v2040 = vadd.f32 %v1956, %v2039
    %v2041 = vpop.f32.mrb[0].mxu0
    %2042 = vmatprep.mubr.f32.mxu0 0.0
    %v2043 = vand.u32 %v1691, 4294901760
    %v2044 = vsub.f32 %v1691, %v2043
    %v2045 = vand.u32 %v2044, 4294901760
    %2046 = vmatmul.mubr.f32.gmra.mrb[0].mxu0 %v2045
    %v2047 = vpop.f32.mrb[0].mxu0
    %v2048 = vadd.f32 %v1963, %v2047
    %v2049 = vpop.f32.mrb[0].mxu0
    %2050 = vdwg.mxu0
    %2051 = vmatprep.subr.mxu0 0.0
    %v2052 = vand.u32 %v1676, 4294901760
    %v2053 = vsub.f32 %v1676, %v2052
    %v2054 = vand.u32 %v2053, 4294901760
    %2055 = vmatpush1.msra.mxu0 %v2054
    %2056 = vmatprep.subr.mxu0 0.0
    %v2057 = vand.u32 %v1677, 4294901760
    %v2058 = vsub.f32 %v1677, %v2057
    %v2059 = vand.u32 %v2058, 4294901760
    %2060 = vmatpush1.msra.mxu0 %v2059
    %2061 = vmatprep.subr.mxu0 0.0
    %v2062 = vand.u32 %v1678, 4294901760
    %v2063 = vsub.f32 %v1678, %v2062
    %v2064 = vand.u32 %v2063, 4294901760
    %2065 = vmatpush1.msra.mxu0 %v2064
    %2066 = vmatprep.subr.mxu0 0.0
    %v2067 = vand.u32 %v1679, 4294901760
    %v2068 = vsub.f32 %v1679, %v2067
    %v2069 = vand.u32 %v2068, 4294901760
    %2070 = vmatpush1.msra.mxu0 %v2069
    %2071 = vmatprep.subr.mxu0 0.0
    %2072 = vmatpush1.msra.mxu0 0.0
    %2073 = vmatprep.subr.mxu0 0.0
    %2074 = vmatpush1.msra.mxu0 0.0
    %2075 = vmatprep.subr.mxu0 0.0
    %2076 = vmatpush1.msra.mxu0 0.0
    %2077 = vmatprep.subr.mxu0 0.0
    %2078 = vmatpush1.msra.mxu0 0.0
    %2079 = vmatprep.subr.mxu0 0.0
    %2080 = vmatpush1.msra.mxu0 0.0
    %2081 = vmatprep.subr.mxu0 0.0
    %2082 = vmatpush1.msra.mxu0 0.0
    %2083 = vmatprep.subr.mxu0 0.0
    %2084 = vmatpush1.msra.mxu0 0.0
    %2085 = vmatprep.subr.mxu0 0.0
    %2086 = vmatpush1.msra.mxu0 0.0
    %2087 = vmatprep.subr.mxu0 0.0
    %2088 = vmatpush1.msra.mxu0 0.0
    %2089 = vmatprep.subr.mxu0 0.0
    %2090 = vmatpush1.msra.mxu0 0.0
    %2091 = vmatprep.subr.mxu0 0.0
    %2092 = vmatpush1.msra.mxu0 0.0
    %2093 = vmatprep.subr.mxu0 0.0
    %2094 = vmatpush1.msra.mxu0 0.0
    %2095 = vmatprep.subr.mxu0 0.0
    %2096 = vmatpush1.msra.mxu0 0.0
    %2097 = vmatprep.subr.mxu0 0.0
    %2098 = vmatpush1.msra.mxu0 0.0
    %2099 = vmatprep.subr.mxu0 0.0
    %2100 = vmatpush1.msra.mxu0 0.0
    %2101 = vmatprep.subr.mxu0 0.0
    %2102 = vmatpush1.msra.mxu0 0.0
    %2103 = vmatprep.subr.mxu0 0.0
    %2104 = vmatpush1.msra.mxu0 0.0
    %2105 = vmatprep.subr.mxu0 0.0
    %2106 = vmatpush1.msra.mxu0 0.0
    %2107 = vmatprep.subr.mxu0 0.0
    %2108 = vmatpush1.msra.mxu0 0.0
    %2109 = vmatprep.subr.mxu0 0.0
    %2110 = vmatpush1.msra.mxu0 0.0
    %2111 = vmatprep.subr.mxu0 0.0
    %2112 = vmatpush1.msra.mxu0 0.0
    %2113 = vmatprep.subr.mxu0 0.0
    %2114 = vmatpush1.msra.mxu0 0.0
    %2115 = vmatprep.subr.mxu0 0.0
    %2116 = vmatpush1.msra.mxu0 0.0
    %2117 = vmatprep.subr.mxu0 0.0
    %2118 = vmatpush1.msra.mxu0 0.0
    %2119 = vmatprep.subr.mxu0 0.0
    %2120 = vmatpush1.msra.mxu0 0.0
    %2121 = vmatprep.subr.mxu0 0.0
    %2122 = vmatpush1.msra.mxu0 0.0
    %2123 = vmatprep.subr.mxu0 0.0
    %2124 = vmatpush1.msra.mxu0 0.0
    %2125 = vmatprep.subr.mxu0 0.0
    %2126 = vmatpush1.msra.mxu0 0.0
    %2127 = vmatprep.mubr.f32.mxu0 0.0
    %v2128 = vand.u32 %v1688, 4294901760
    %2129 = vmatmul.mubr.f32.gmra.mrb[0].mxu0 %v2128
    %v2130 = vpop.f32.mrb[0].mxu0
    %v2131 = vadd.f32 %v2040, %v2130
    %v2132 = vpop.f32.mrb[0].mxu0
    %2133 = vmatprep.mubr.f32.mxu0 0.0
    %v2134 = vand.u32 %v1691, 4294901760
    %2135 = vmatmul.mubr.f32.gmra.mrb[0].mxu0 %v2134
    %v2136 = vpop.f32.mrb[0].mxu0
    %v2137 = vadd.f32 %v2048, %v2136
    %v2138 = vpop.f32.mrb[0].mxu0
    %2139 = vdwg.mxu0
    %2140 = vmatprep.subr.mxu0 0.0
    %v2141 = vand.u32 %v1676, 4294901760
    %2142 = vmatpush1.msra.mxu0 %v2141
    %2143 = vmatprep.subr.mxu0 0.0
    %v2144 = vand.u32 %v1677, 4294901760
    %2145 = vmatpush1.msra.mxu0 %v2144
    %2146 = vmatprep.subr.mxu0 0.0
    %v2147 = vand.u32 %v1678, 4294901760
    %2148 = vmatpush1.msra.mxu0 %v2147
    %2149 = vmatprep.subr.mxu0 0.0
    %v2150 = vand.u32 %v1679, 4294901760
    %2151 = vmatpush1.msra.mxu0 %v2150
    %2152 = vmatprep.subr.mxu0 0.0
    %2153 = vmatpush1.msra.mxu0 0.0
    %2154 = vmatprep.subr.mxu0 0.0
    %2155 = vmatpush1.msra.mxu0 0.0
    %2156 = vmatprep.subr.mxu0 0.0
    %2157 = vmatpush1.msra.mxu0 0.0
    %2158 = vmatprep.subr.mxu0 0.0
    %2159 = vmatpush1.msra.mxu0 0.0
    %2160 = vmatprep.subr.mxu0 0.0
    %2161 = vmatpush1.msra.mxu0 0.0
    %2162 = vmatprep.subr.mxu0 0.0
    %2163 = vmatpush1.msra.mxu0 0.0
    %2164 = vmatprep.subr.mxu0 0.0
    %2165 = vmatpush1.msra.mxu0 0.0
    %2166 = vmatprep.subr.mxu0 0.0
    %2167 = vmatpush1.msra.mxu0 0.0
    %2168 = vmatprep.subr.mxu0 0.0
    %2169 = vmatpush1.msra.mxu0 0.0
    %2170 = vmatprep.subr.mxu0 0.0
    %2171 = vmatpush1.msra.mxu0 0.0
    %2172 = vmatprep.subr.mxu0 0.0
    %2173 = vmatpush1.msra.mxu0 0.0
    %2174 = vmatprep.subr.mxu0 0.0
    %2175 = vmatpush1.msra.mxu0 0.0
    %2176 = vmatprep.subr.mxu0 0.0
    %2177 = vmatpush1.msra.mxu0 0.0
    %2178 = vmatprep.subr.mxu0 0.0
    %2179 = vmatpush1.msra.mxu0 0.0
    %2180 = vmatprep.subr.mxu0 0.0
    %2181 = vmatpush1.msra.mxu0 0.0
    %2182 = vmatprep.subr.mxu0 0.0
    %2183 = vmatpush1.msra.mxu0 0.0
    %2184 = vmatprep.subr.mxu0 0.0
    %2185 = vmatpush1.msra.mxu0 0.0
    %2186 = vmatprep.subr.mxu0 0.0
    %2187 = vmatpush1.msra.mxu0 0.0
    %2188 = vmatprep.subr.mxu0 0.0
    %2189 = vmatpush1.msra.mxu0 0.0
    %2190 = vmatprep.subr.mxu0 0.0
    %2191 = vmatpush1.msra.mxu0 0.0
    %2192 = vmatprep.subr.mxu0 0.0
    %2193 = vmatpush1.msra.mxu0 0.0
    %2194 = vmatprep.subr.mxu0 0.0
    %2195 = vmatpush1.msra.mxu0 0.0
    %2196 = vmatprep.subr.mxu0 0.0
    %2197 = vmatpush1.msra.mxu0 0.0
    %2198 = vmatprep.subr.mxu0 0.0
    %2199 = vmatpush1.msra.mxu0 0.0
    %2200 = vmatprep.subr.mxu0 0.0
    %2201 = vmatpush1.msra.mxu0 0.0
    %2202 = vmatprep.subr.mxu0 0.0
    %2203 = vmatpush1.msra.mxu0 0.0
    %2204 = vmatprep.subr.mxu0 0.0
    %2205 = vmatpush1.msra.mxu0 0.0
    %2206 = vmatprep.subr.mxu0 0.0
    %2207 = vmatpush1.msra.mxu0 0.0
    %2208 = vmatprep.mubr.f32.mxu0 0.0
    %v2209 = vand.u32 %v1688, 4294901760
    %2210 = vmatmul.mubr.f32.gmra.mrb[0].mxu0 %v2209
    %v2211 = vpop.f32.mrb[0].mxu0
    %v2212 = vadd.f32 %v2131, %v2211
    %v2213 = vpop.f32.mrb[0].mxu0
    %2214 = vmatprep.mubr.f32.mxu0 0.0
    %v2215 = vand.u32 %v1691, 4294901760
    %2216 = vmatmul.mubr.f32.gmra.mrb[0].mxu0 %v2215
    %v2217 = vpop.f32.mrb[0].mxu0
    %v2218 = vadd.f32 %v2137, %v2217
    %v2219 = vpop.f32.mrb[0].mxu0
    %2220 = vdwg.mxu0
    %vm2221 = vcmask 31744
    %2222 = vst.msk [vmem:[%s7] sm:$0xff] %vm2221, %v2212
    %2223 = vst.msk [vmem:[%s7 + $0x8] sm:$0xff] %vm2221, %v2218
    // Predicated region
    $region34: #{tpu_custom_call.1} parent=1 // pred_check
      _
    $region35: #{tpu_custom_call.1} parent=1 // pred_check_branch
      %2225 = sbr.rel (0) target = $region37
    $region36: #{tpu_custom_call.1} parent=1 // pred_region
      _
    $region37: #{tpu_custom_call.1} parent=1 // pred_fallthru
      _
    // Predicated region
    $region38: #{tpu_custom_call.1} parent=1 // pred_check
      _
    $region39: #{tpu_custom_call.1} parent=1 // pred_check_branch
      %2227 = sbr.rel (0) target = $region41
    $region40: #{tpu_custom_call.1} parent=1 // pred_region
      _
    $region41: #{tpu_custom_call.1} parent=1 // pred_fallthru
      _
    %2228 = vsyncpa [#allocation3], 1

</llo_original>
